<compile_context>
chip_gen: v7x
topology: tpu7x:2x2x1
jax: 0.10.0
libtpu: 0.0.40
codegen_flags: <defaults>
</compile_context>

<pallas_src>
import functools

import jax
import jax.numpy as jnp
import numpy as np
from jax import lax
from jax.experimental import pallas as pl
from jax.experimental.pallas import tpu as pltpu


# ----------------------------- tiling helpers ------------------------------

_TILE_CANDIDATES = (4096, 2048, 1024, 512, 256, 128)
_VMEM_BUDGET_BYTES = 20 * 1024 * 1024       # working-set budget (streams + scratch)
_DB_SCRATCH_BUDGET_BYTES = 12 * 1024 * 1024  # max full-size dB scratch kept in VMEM
_VMEM_LIMIT_BYTES = 32 * 1024 * 1024         # scoped VMEM limit (ok on v5e/v6e/v7x)


def _round_up(n: int, m: int) -> int:
    return -(-n // m) * m


def _pick_tile(m: int, f_pad: int, n_streams: int, extra_bytes: int) -> int:
    """Largest lane-dense frame tile dividing f_pad that fits the VMEM budget.

    Prefers >= 2 tiles per phase (when possible) so the HBM DMAs overlap compute.
    """
    target = f_pad if f_pad < 256 else max(128, f_pad // 2)
    for t in _TILE_CANDIDATES:
        if (t <= target and f_pad % t == 0
                and extra_bytes + n_streams * 2 * m * t * 4 <= _VMEM_BUDGET_BYTES):
            return t
    return 128  # f_pad is always a multiple of 128 after wrapper-side padding


def _pad_frames(x, f_pad):
    m, f = x.shape
    if f == f_pad:
        return x
    return jnp.pad(x, ((0, 0), (0, f_pad - f)))


# --------------------------- in-kernel elementwise --------------------------

_AMIN = 1e-10
_TEN_OVER_LN10 = 10.0 / float(np.log(10.0))


def _power_to_db(x):
    # torchaudio.transforms.AmplitudeToDB(stype="power", top_db=None), ref_value=1.0
    return _TEN_OVER_LN10 * jnp.log(jnp.maximum(x, _AMIN))


# ----------------------------- Pallas kernels ------------------------------

def _norm_fused_kernel(x_ref, out_ref, *scratch,
                       per_row, inv_n, to_db, tile, f_valid, use_db):
    """Fused normalize: grid (2, n_tiles).

    phase 0: x tile -> (dB) -> accumulate sum/(sum of squares) around a first-tile
             offset, stash dB tile in VMEM scratch; finalize mean & inv_std.
    phase 1: y = (dB - mean) * inv_std  -> out tile.
    """
    if use_db:
        db_ref, mean_ref, istd_ref, c_ref = scratch
    else:
        mean_ref, istd_ref, c_ref = scratch
    p = pl.program_id(0)
    t = pl.program_id(1)
    axes = (1,) if per_row else (0, 1)

    @pl.when(p == 0)
    def _stats_phase():
        x = x_ref[...].astype(jnp.float32)
        if to_db:
            x = _power_to_db(x)
        col = t * tile + lax.broadcasted_iota(jnp.int32, x.shape, 1)
        valid = (col < f_valid).astype(jnp.float32)

        @pl.when(t == 0)
        def _init():
            cnt = jnp.sum(valid, axis=axes, keepdims=True)
            c_ref[...] = jnp.sum(x * valid, axis=axes, keepdims=True) / cnt
            mean_ref[...] = jnp.zeros_like(mean_ref)   # running sum of (x - c)
            istd_ref[...] = jnp.zeros_like(istd_ref)   # running sum of (x - c)^2

        xc = (x - c_ref[...]) * valid
        mean_ref[...] += jnp.sum(xc, axis=axes, keepdims=True)
        istd_ref[...] += jnp.sum(xc * xc, axis=axes, keepdims=True)

        if use_db:
            start = pl.multiple_of(t * tile, 128)
            db_ref[:, pl.ds(start, tile)] = x

        @pl.when(t == pl.num_programs(1) - 1)
        def _finalize():
            dm = mean_ref[...] * inv_n
            var = jnp.maximum(istd_ref[...] * inv_n - dm * dm, 0.0)
            mean_ref[...] = c_ref[...] + dm
            istd_ref[...] = 1.0 / jnp.sqrt(var)   # inv_std: no per-element divide later

    @pl.when(p == 1)
    def _apply_phase():
        if use_db:
            start = pl.multiple_of(t * tile, 128)
            xv = db_ref[:, pl.ds(start, tile)]
        else:
            xv = x_ref[...].astype(jnp.float32)
            if to_db:
                xv = _power_to_db(xv)
        out_ref[...] = ((xv - mean_ref[...]) * istd_ref[...]).astype(out_ref.dtype)


def _denorm_fused_kernel(ref_ref, mel_ref, out_ref, mean_ref, std_ref, c_ref,
                         *, per_row, inv_n, ref_to_db, tile, f_valid):
    """Fused de-normalize: grid (2, n_tiles).

    phase 0: reference tile -> (dB) -> accumulate stats; finalize mean & std.
    phase 1: y = mel * std + mean -> out tile.
    """
    p = pl.program_id(0)
    t = pl.program_id(1)
    axes = (1,) if per_row else (0, 1)

    @pl.when(p == 0)
    def _stats_phase():
        x = ref_ref[...].astype(jnp.float32)
        if ref_to_db:
            x = _power_to_db(x)
        col = t * tile + lax.broadcasted_iota(jnp.int32, x.shape, 1)
        valid = (col < f_valid).astype(jnp.float32)

        @pl.when(t == 0)
        def _init():
            cnt = jnp.sum(valid, axis=axes, keepdims=True)
            c_ref[...] = jnp.sum(x * valid, axis=axes, keepdims=True) / cnt
            mean_ref[...] = jnp.zeros_like(mean_ref)
            std_ref[...] = jnp.zeros_like(std_ref)

        xc = (x - c_ref[...]) * valid
        mean_ref[...] += jnp.sum(xc, axis=axes, keepdims=True)
        std_ref[...] += jnp.sum(xc * xc, axis=axes, keepdims=True)

        @pl.when(t == pl.num_programs(1) - 1)
        def _finalize():
            dm = mean_ref[...] * inv_n
            var = jnp.maximum(std_ref[...] * inv_n - dm * dm, 0.0)
            mean_ref[...] = c_ref[...] + dm
            std_ref[...] = jnp.sqrt(var)

    @pl.when(p == 1)
    def _apply_phase():
        y = mel_ref[...].astype(jnp.float32) * std_ref[...] + mean_ref[...]
        out_ref[...] = y.astype(out_ref.dtype)


def _db_kernel(x_ref, out_ref):
    out_ref[...] = _power_to_db(x_ref[...].astype(jnp.float32)).astype(out_ref.dtype)


# ------------------------------ pallas_call wrappers ------------------------

def _fused_normalize(x, *, per_row: bool, to_db: bool, use_db=None):
    m, f = x.shape
    f_pad = _round_up(f, 128)
    db_bytes = m * f_pad * 4
    if use_db is None:
        use_db = db_bytes <= _DB_SCRATCH_BUDGET_BYTES
    extra = db_bytes if use_db else 0
    tile = _pick_tile(m, f_pad, n_streams=2, extra_bytes=extra)
    nt = f_pad // tile
    xp = _pad_frames(x, f_pad)
    rdim = m if per_row else 1
    inv_n = 1.0 / (float(f) if per_row else float(m * f))

    kernel = functools.partial(_norm_fused_kernel, per_row=per_row, inv_n=inv_n,
                               to_db=to_db, tile=tile, f_valid=f, use_db=use_db)

    scratch = []
    if use_db:
        scratch.append(pltpu.VMEM((m, f_pad), jnp.float32))
    scratch += [pltpu.VMEM((rdim, 1), jnp.float32)] * 3   # mean/sum, istd/sumsq, offset

    if use_db:
        # phase 0 streams tiles; phase 1 keeps the last block resident (no re-fetch).
        x_map = lambda p, t: (0, t * (1 - p) + (nt - 1) * p)
    else:
        # no dB scratch: phase 1 re-reads tiles from HBM and recomputes dB.
        x_map = lambda p, t: (0, t)
    out_map = lambda p, t: (0, t * p)   # held at block 0 during phase 0 (never written back)

    out = pl.pallas_call(
        kernel,
        out_shape=jax.ShapeDtypeStruct((m, f_pad), x.dtype),
        grid=(2, nt),
        in_specs=[pl.BlockSpec((m, tile), x_map)],
        out_specs=pl.BlockSpec((m, tile), out_map),
        scratch_shapes=scratch,
        compiler_params=pltpu.CompilerParams(
            dimension_semantics=("arbitrary", "arbitrary"),
            vmem_limit_bytes=_VMEM_LIMIT_BYTES),
        cost_estimate=pl.CostEstimate(
            flops=8 * m * f_pad,
            transcendentals=(m * f_pad * (1 if use_db else 2) if to_db else 0),
            bytes_accessed=(2 if use_db else 3) * m * f_pad * 4),
    )(xp)
    return out if f_pad == f else out[:, :f]


def _fused_denorm(mel, ref, *, per_row: bool, ref_to_db: bool):
    assert mel.shape == ref.shape, "mel and reference spectrogram must share a shape"
    m, f = mel.shape
    f_pad = _round_up(f, 128)
    tile = _pick_tile(m, f_pad, n_streams=3, extra_bytes=0)
    nt = f_pad // tile
    melp = _pad_frames(mel, f_pad)
    refp = _pad_frames(ref, f_pad)
    rdim = m if per_row else 1
    inv_n = 1.0 / (float(f) if per_row else float(m * f))

    kernel = functools.partial(_denorm_fused_kernel, per_row=per_row, inv_n=inv_n,
                               ref_to_db=ref_to_db, tile=tile, f_valid=f)

    ref_map = lambda p, t: (0, t * (1 - p) + (nt - 1) * p)   # streamed in phase 0 only
    mel_map = lambda p, t: (0, t * p)                        # streamed in phase 1 only
    out_map = lambda p, t: (0, t * p)

    out = pl.pallas_call(
        kernel,
        out_shape=jax.ShapeDtypeStruct((m, f_pad), mel.dtype),
        grid=(2, nt),
        in_specs=[pl.BlockSpec((m, tile), ref_map),
                  pl.BlockSpec((m, tile), mel_map)],
        out_specs=pl.BlockSpec((m, tile), out_map),
        scratch_shapes=[pltpu.VMEM((rdim, 1), jnp.float32)] * 3,  # mean, std, offset
        compiler_params=pltpu.CompilerParams(
            dimension_semantics=("arbitrary", "arbitrary"),
            vmem_limit_bytes=_VMEM_LIMIT_BYTES),
        cost_estimate=pl.CostEstimate(
            flops=8 * m * f_pad,
            transcendentals=(m * f_pad if ref_to_db else 0),
            bytes_accessed=3 * m * f_pad * 4),
    )(refp, melp)
    return out if f_pad == f else out[:, :f]


def _amplitude_to_db(x):
    m, f = x.shape
    f_pad = _round_up(f, 128)
    tile = _pick_tile(m, f_pad, n_streams=2, extra_bytes=0)
    xp = _pad_frames(x, f_pad)
    out = pl.pallas_call(
        _db_kernel,
        out_shape=jax.ShapeDtypeStruct((m, f_pad), jnp.float32),
        grid=(f_pad // tile,),
        in_specs=[pl.BlockSpec((m, tile), lambda t: (0, t))],
        out_specs=pl.BlockSpec((m, tile), lambda t: (0, t)),
        compiler_params=pltpu.CompilerParams(
            dimension_semantics=("parallel",),
            vmem_limit_bytes=_VMEM_LIMIT_BYTES),
        cost_estimate=pl.CostEstimate(
            flops=2 * m * f_pad, transcendentals=m * f_pad,
            bytes_accessed=2 * m * f_pad * 4),
    )(xp)
    return out if f_pad == f else out[:, :f]


# -------------------- normalizers (single-arg, used by forward) -------------

def normalize_mvn(mel_spec, *, to_db: bool = False):
    return _fused_normalize(mel_spec, per_row=False, to_db=to_db)


def normalize_strip_mvn(mel_spec, *, to_db: bool = False):
    return _fused_normalize(mel_spec, per_row=True, to_db=to_db)


def normalize_none(mel_spec, *, to_db: bool = False):
    if not to_db:
        return mel_spec            # identity: no kernel, no HBM traffic
    return _amplitude_to_db(mel_spec)


# ---------------- de-normalizers (two-arg, used by de_norm) ------------------

def denorm_mvn(mel_spec, non_normed_mel_spec, *, ref_to_db: bool = False):
    return _fused_denorm(mel_spec, non_normed_mel_spec, per_row=False, ref_to_db=ref_to_db)


def denorm_strip_mvn(mel_spec, non_normed_mel_spec, *, ref_to_db: bool = False):
    return _fused_denorm(mel_spec, non_normed_mel_spec, per_row=True, ref_to_db=ref_to_db)


def denorm_none(mel_spec, non_normed_mel_spec=None, **_):
    return mel_spec                # identity: no kernel


# ------------------------------ module port ----------------------------------

class MelSpecTransformNewNew:
    """JAX/Pallas port of MelSpecTransformNewNew's normalization compute.

    Spectrograms are laid out (n_mels, n_frames) with frames on the TPU lane axis.
    Note: std==0 (constant input) yields inf/nan in the normalize path, matching torch.
    """

    def __init__(self, sample_rate, n_fft=400, n_mels=64,
                 normalizer=None, denormalizer=None):
        self.sample_rate = sample_rate
        self.n_fft = n_fft
        self.n_stft = n_fft // 2 + 1
        self.n_mels = n_mels
        self.normalizer = normalizer if normalizer is not None else normalize_mvn
        self.denormalizer = denormalizer if denormalizer is not None else denorm_mvn

    def forward(self, power_mel_spec):
        # TODO(synk): torchaudio.transforms.MelSpectrogram (STFT + mel filterbank) has no
        # clean Pallas equivalent; forward consumes the power mel spectrogram directly.
        # AmplitudeToDB(stype='power') is fused into the normalizer's single-call kernel.
        return self.normalizer(power_mel_spec, to_db=True)

    __call__ = forward

    def de_norm(self, this_mel_spec, power_mel_spec):
        # Reference statistics are taken on the dB mel of the waveform spectrogram,
        # converted to dB inside phase 0 of the fused kernel (never materialized in HBM).
        return self.denormalizer(this_mel_spec, power_mel_spec, ref_to_db=True)

    def inverse(self, mel_spec):
        # TODO(synk): InverseMelScale + GriffinLim are iterative FFT-based solvers with no
        # clean Pallas equivalent; not implemented in this port.
        raise NotImplementedError("inverse() is not implemented in the Pallas port")


# --------------------------------- main --------------------------------------

if __name__ == "__main__":
    key = jax.random.PRNGKey(0)
    k1, k2, k3 = jax.random.split(key, 3)

    n_mels, n_frames = 64, 2048            # frames on the 128-wide lane axis
    mel = jax.random.normal(k1, (n_mels, n_frames), dtype=jnp.float32)
    raw = 3.0 * jax.random.normal(k2, (n_mels, n_frames), dtype=jnp.float32) + 1.5
    power = jax.random.uniform(k3, (n_mels, n_frames), dtype=jnp.float32,
                               minval=1e-4, maxval=10.0)

    # de-normalizers (stats from the reference spectrogram)
    out_d_mvn = denorm_mvn(mel, raw)
    out_d_strip = denorm_strip_mvn(mel, raw)
    out_d_none = denorm_none(mel, raw)

    # normalizers (stats from the input itself, as in forward)
    out_n_mvn = normalize_mvn(mel)
    out_n_strip = normalize_strip_mvn(mel)
    out_db_only = normalize_none(power, to_db=True)

    # full module paths: fused AmplitudeToDB + normalization in a single pallas_call
    mdl = MelSpecTransformNewNew(sample_rate=16000, n_mels=n_mels,
                                 normalizer=normalize_mvn, denormalizer=denorm_mvn)
    out_fwd = mdl(power)
    out_dnm = mdl.de_norm(mel, power)

    # no-dB-scratch fallback path (large-spectrogram regime), forced for coverage
    out_fwd_nodb = _fused_normalize(power, per_row=False, to_db=True, use_db=False)

    # ragged / non-128-multiple frame count: padded + masked path
    small_mel = jax.random.normal(k1, (13, 300), dtype=jnp.float32)
    small_raw = 2.0 * jax.random.normal(k2, (13, 300), dtype=jnp.float32) - 0.5
    out_small = denorm_strip_mvn(small_mel, small_raw)
    out_small_n = normalize_strip_mvn(small_mel)

    jax.block_until_ready((out_d_mvn, out_d_strip, out_d_none, out_n_mvn, out_n_strip,
                           out_db_only, out_fwd, out_dnm, out_fwd_nodb,
                           out_small, out_small_n))

    # ------------- pure-JAX references (torch semantics, population std) -------------
    ref_d_mvn = mel * jnp.std(raw) + jnp.mean(raw)
    ref_d_strip = (mel * jnp.std(raw, axis=1, keepdims=True)
                   + jnp.mean(raw, axis=1, keepdims=True))
    ref_n_mvn = (mel - jnp.mean(mel)) / jnp.std(mel)
    ref_n_strip = ((mel - jnp.mean(mel, axis=1, keepdims=True))
                   / jnp.std(mel, axis=1, keepdims=True))
    db = 10.0 * jnp.log10(jnp.maximum(power, 1e-10))
    ref_fwd = (db - jnp.mean(db)) / jnp.std(db)
    ref_dnm = mel * jnp.std(db) + jnp.mean(db)
    ref_small = (small_mel * jnp.std(small_raw, axis=1, keepdims=True)
                 + jnp.mean(small_raw, axis=1, keepdims=True))
    ref_small_n = ((small_mel - jnp.mean(small_mel, axis=1, keepdims=True))
                   / jnp.std(small_mel, axis=1, keepdims=True))

    def check(a, b, atol=1e-3, rtol=1e-4):
        a = np.asarray(a); b = np.asarray(b)
        assert np.allclose(a, b, rtol=rtol, atol=atol), float(np.max(np.abs(a - b)))

    check(out_d_mvn, ref_d_mvn)
    check(out_d_strip, ref_d_strip)
    assert np.array_equal(np.asarray(out_d_none), np.asarray(mel))
    check(out_n_mvn, ref_n_mvn)
    check(out_n_strip, ref_n_strip)
    check(out_db_only, db, atol=2e-3, rtol=1e-3)
    check(out_fwd, ref_fwd, atol=2e-3, rtol=1e-3)
    check(out_fwd_nodb, ref_fwd, atol=2e-3, rtol=1e-3)
    check(out_dnm, ref_dnm, atol=2e-3, rtol=1e-3)
    check(out_small, ref_small)
    check(out_small_n, ref_small_n)

    print("KERNEL_OK")
</pallas_src>

<mosaic_0001>
module attributes {stable_mosaic.version = 11 : i64} {
  func.func @_denorm_fused_kernel(%arg0: i32, %arg1: i32, %arg2: memref<64x1024xf32, #tpu.memory_space<vmem>>, %arg3: memref<64x1024xf32, #tpu.memory_space<vmem>>, %arg4: memref<64x1024xf32, #tpu.memory_space<vmem>>, %arg5: memref<1x1xf32, #tpu.memory_space<vmem>>, %arg6: memref<1x1xf32, #tpu.memory_space<vmem>>, %arg7: memref<1x1xf32, #tpu.memory_space<vmem>>) attributes {dimension_semantics = [#tpu.dimension_semantics<arbitrary>, #tpu.dimension_semantics<arbitrary>], iteration_bounds = array<i64: 2, 2>, scalar_prefetch = 0 : i64, scratch_operands = 3 : i64, tpu.core_type = #tpu.core_type<tc>, window_params = [{transform_indices = @transform_0, window_bounds = array<i64: 64, 1024>}, {transform_indices = @transform_1, window_bounds = array<i64: 64, 1024>}, {transform_indices = @transform_2, window_bounds = array<i64: 64, 1024>}]} {
    %c0_i32 = arith.constant 0 : i32
    %0 = arith.cmpi eq, %arg0, %c0_i32 : i32
    %1 = arith.extui %0 : i1 to i32
    %c0_i32_0 = arith.constant 0 : i32
    %2 = arith.cmpi ne, %1, %c0_i32_0 : i32
    scf.if %2 {
      %c0 = arith.constant 0 : index
      %c0_2 = arith.constant 0 : index
      %6 = vector.load %arg2[%c0, %c0_2] : memref<64x1024xf32, #tpu.memory_space<vmem>>, vector<64x1024xf32>
      %c1024_i32 = arith.constant 1024 : i32
      %7 = arith.muli %arg1, %c1024_i32 : i32
      %8 = tpu.iota {dimensions = array<i32: 1>} : vector<64x1024xi32>
      %9 = vector.broadcast %7 : i32 to vector<64x1024xi32>
      %10 = arith.addi %9, %8 : vector<64x1024xi32>
      %c2048_i32 = arith.constant 2048 : i32
      %11 = vector.broadcast %c2048_i32 : i32 to vector<64x1024xi32>
      %12 = arith.cmpi slt, %10, %11 : vector<64x1024xi32>
      %13 = arith.extui %12 : vector<64x1024xi1> to vector<64x1024xi32>
      %14 = arith.sitofp %13 : vector<64x1024xi32> to vector<64x1024xf32>
      %c0_i32_3 = arith.constant 0 : i32
      %15 = arith.cmpi eq, %arg1, %c0_i32_3 : i32
      %16 = arith.extui %15 : i1 to i32
      %c0_i32_4 = arith.constant 0 : i32
      %17 = arith.cmpi ne, %16, %c0_i32_4 : i32
      scf.if %17 {
        %42 = vector.shape_cast %14 : vector<64x1024xf32> to vector<1x64x1024xf32>
        %cst_18 = arith.constant dense<0.000000e+00> : vector<1xf32>
        %43 = vector.multi_reduction <add>, %42, %cst_18 [1, 2] : vector<1x64x1024xf32> to vector<1xf32>
        %44 = vector.shape_cast %43 : vector<1xf32> to vector<1x1x1xf32>
        %45 = vector.extract %44[0, 0, 0] : f32 from vector<1x1x1xf32>
        %46 = vector.broadcast %45 : f32 to vector<1x1xf32>
        %47 = arith.mulf %6, %14 : vector<64x1024xf32>
        %48 = vector.shape_cast %47 : vector<64x1024xf32> to vector<1x64x1024xf32>
        %cst_19 = arith.constant dense<0.000000e+00> : vector<1xf32>
        %49 = vector.multi_reduction <add>, %48, %cst_19 [1, 2] : vector<1x64x1024xf32> to vector<1xf32>
        %50 = vector.shape_cast %49 : vector<1xf32> to vector<1x1x1xf32>
        %51 = vector.extract %50[0, 0, 0] : f32 from vector<1x1x1xf32>
        %52 = vector.broadcast %51 : f32 to vector<1x1xf32>
        %53 = arith.divf %52, %46 : vector<1x1xf32>
        %c0_20 = arith.constant 0 : index
        %c0_21 = arith.constant 0 : index
        %54 = vector.load %arg7[%c0_20, %c0_21] : memref<1x1xf32, #tpu.memory_space<vmem>>, vector<1x1xf32>
        tpu.vector_store %arg7[%c0_20, %c0_21], %53 {strides = array<i32>} : memref<1x1xf32, #tpu.memory_space<vmem>>, vector<1x1xf32>,
        %cst_22 = arith.constant 0.000000e+00 : f32
        %55 = vector.broadcast %cst_22 : f32 to vector<1x1xf32>
        %c0_23 = arith.constant 0 : index
        %c0_24 = arith.constant 0 : index
        %56 = vector.load %arg5[%c0_23, %c0_24] : memref<1x1xf32, #tpu.memory_space<vmem>>, vector<1x1xf32>
        tpu.vector_store %arg5[%c0_23, %c0_24], %55 {strides = array<i32>} : memref<1x1xf32, #tpu.memory_space<vmem>>, vector<1x1xf32>,
        %cst_25 = arith.constant 0.000000e+00 : f32
        %57 = vector.broadcast %cst_25 : f32 to vector<1x1xf32>
        %c0_26 = arith.constant 0 : index
        %c0_27 = arith.constant 0 : index
        %58 = vector.load %arg6[%c0_26, %c0_27] : memref<1x1xf32, #tpu.memory_space<vmem>>, vector<1x1xf32>
        tpu.vector_store %arg6[%c0_26, %c0_27], %57 {strides = array<i32>} : memref<1x1xf32, #tpu.memory_space<vmem>>, vector<1x1xf32>,
      } else {
      }
      %c0_5 = arith.constant 0 : index
      %c0_6 = arith.constant 0 : index
      %18 = vector.load %arg7[%c0_5, %c0_6] : memref<1x1xf32, #tpu.memory_space<vmem>>, vector<1x1xf32>
      %19 = vector.broadcast %18 : vector<1x1xf32> to vector<64x1024xf32>
      %20 = arith.subf %6, %19 : vector<64x1024xf32>
      %21 = arith.mulf %20, %14 : vector<64x1024xf32>
      %c0_7 = arith.constant 0 : index
      %c0_8 = arith.constant 0 : index
      %22 = vector.load %arg5[%c0_7, %c0_8] : memref<1x1xf32, #tpu.memory_space<vmem>>, vector<1x1xf32>
      %23 = vector.shape_cast %21 : vector<64x1024xf32> to vector<1x64x1024xf32>
      %cst = arith.constant dense<0.000000e+00> : vector<1xf32>
      %24 = vector.multi_reduction <add>, %23, %cst [1, 2] : vector<1x64x1024xf32> to vector<1xf32>
      %25 = vector.shape_cast %24 : vector<1xf32> to vector<1x1x1xf32>
      %26 = vector.extract %25[0, 0, 0] : f32 from vector<1x1x1xf32>
      %27 = vector.broadcast %26 : f32 to vector<1x1xf32>
      %28 = arith.addf %22, %27 : vector<1x1xf32>
      %c0_9 = arith.constant 0 : index
      %c0_10 = arith.constant 0 : index
      %29 = vector.load %arg5[%c0_9, %c0_10] : memref<1x1xf32, #tpu.memory_space<vmem>>, vector<1x1xf32>
      tpu.vector_store %arg5[%c0_9, %c0_10], %28 {strides = array<i32>} : memref<1x1xf32, #tpu.memory_space<vmem>>, vector<1x1xf32>,
      %c0_11 = arith.constant 0 : index
      %c0_12 = arith.constant 0 : index
      %30 = vector.load %arg6[%c0_11, %c0_12] : memref<1x1xf32, #tpu.memory_space<vmem>>, vector<1x1xf32>
      %31 = arith.mulf %21, %21 : vector<64x1024xf32>
      %32 = vector.shape_cast %31 : vector<64x1024xf32> to vector<1x64x1024xf32>
      %cst_13 = arith.constant dense<0.000000e+00> : vector<1xf32>
      %33 = vector.multi_reduction <add>, %32, %cst_13 [1, 2] : vector<1x64x1024xf32> to vector<1xf32>
      %34 = vector.shape_cast %33 : vector<1xf32> to vector<1x1x1xf32>
      %35 = vector.extract %34[0, 0, 0] : f32 from vector<1x1x1xf32>
      %36 = vector.broadcast %35 : f32 to vector<1x1xf32>
      %37 = arith.addf %30, %36 : vector<1x1xf32>
      %c0_14 = arith.constant 0 : index
      %c0_15 = arith.constant 0 : index
      %38 = vector.load %arg6[%c0_14, %c0_15] : memref<1x1xf32, #tpu.memory_space<vmem>>, vector<1x1xf32>
      tpu.vector_store %arg6[%c0_14, %c0_15], %37 {strides = array<i32>} : memref<1x1xf32, #tpu.memory_space<vmem>>, vector<1x1xf32>,
      %c1_i32_16 = arith.constant 1 : i32
      %39 = arith.cmpi eq, %arg1, %c1_i32_16 : i32
      %40 = arith.extui %39 : i1 to i32
      %c0_i32_17 = arith.constant 0 : i32
      %41 = arith.cmpi ne, %40, %c0_i32_17 : i32
      scf.if %41 {
        %c0_18 = arith.constant 0 : index
        %c0_19 = arith.constant 0 : index
        %42 = vector.load %arg5[%c0_18, %c0_19] : memref<1x1xf32, #tpu.memory_space<vmem>>, vector<1x1xf32>
        %cst_20 = arith.constant 7.62939453E-6 : f32
        %43 = vector.broadcast %cst_20 : f32 to vector<1x1xf32>
        %44 = arith.mulf %42, %43 : vector<1x1xf32>
        %c0_21 = arith.constant 0 : index
        %c0_22 = arith.constant 0 : index
        %45 = vector.load %arg6[%c0_21, %c0_22] : memref<1x1xf32, #tpu.memory_space<vmem>>, vector<1x1xf32>
        %cst_23 = arith.constant 7.62939453E-6 : f32
        %46 = vector.broadcast %cst_23 : f32 to vector<1x1xf32>
        %47 = arith.mulf %45, %46 : vector<1x1xf32>
        %48 = arith.mulf %44, %44 : vector<1x1xf32>
        %49 = arith.subf %47, %48 : vector<1x1xf32>
        %cst_24 = arith.constant 0.000000e+00 : f32
        %50 = vector.broadcast %cst_24 : f32 to vector<1x1xf32>
        %51 = arith.maximumf %49, %50 : vector<1x1xf32>
        %c0_25 = arith.constant 0 : index
        %c0_26 = arith.constant 0 : index
        %52 = vector.load %arg7[%c0_25, %c0_26] : memref<1x1xf32, #tpu.memory_space<vmem>>, vector<1x1xf32>
        %53 = arith.addf %52, %44 : vector<1x1xf32>
        %c0_27 = arith.constant 0 : index
        %c0_28 = arith.constant 0 : index
        %54 = vector.load %arg5[%c0_27, %c0_28] : memref<1x1xf32, #tpu.memory_space<vmem>>, vector<1x1xf32>
        tpu.vector_store %arg5[%c0_27, %c0_28], %53 {strides = array<i32>} : memref<1x1xf32, #tpu.memory_space<vmem>>, vector<1x1xf32>,
        %55 = math.sqrt %51 : vector<1x1xf32>
        %c0_29 = arith.constant 0 : index
        %c0_30 = arith.constant 0 : index
        %56 = vector.load %arg6[%c0_29, %c0_30] : memref<1x1xf32, #tpu.memory_space<vmem>>, vector<1x1xf32>
        tpu.vector_store %arg6[%c0_29, %c0_30], %55 {strides = array<i32>} : memref<1x1xf32, #tpu.memory_space<vmem>>, vector<1x1xf32>,
      } else {
      }
    } else {
    }
    %c1_i32 = arith.constant 1 : i32
    %3 = arith.cmpi eq, %arg0, %c1_i32 : i32
    %4 = arith.extui %3 : i1 to i32
    %c0_i32_1 = arith.constant 0 : i32
    %5 = arith.cmpi ne, %4, %c0_i32_1 : i32
    scf.if %5 {
      %c0 = arith.constant 0 : index
      %c0_2 = arith.constant 0 : index
      %6 = vector.load %arg3[%c0, %c0_2] : memref<64x1024xf32, #tpu.memory_space<vmem>>, vector<64x1024xf32>
      %c0_3 = arith.constant 0 : index
      %c0_4 = arith.constant 0 : index
      %7 = vector.load %arg6[%c0_3, %c0_4] : memref<1x1xf32, #tpu.memory_space<vmem>>, vector<1x1xf32>
      %8 = vector.broadcast %7 : vector<1x1xf32> to vector<64x1024xf32>
      %9 = arith.mulf %6, %8 : vector<64x1024xf32>
      %c0_5 = arith.constant 0 : index
      %c0_6 = arith.constant 0 : index
      %10 = vector.load %arg5[%c0_5, %c0_6] : memref<1x1xf32, #tpu.memory_space<vmem>>, vector<1x1xf32>
      %11 = vector.broadcast %10 : vector<1x1xf32> to vector<64x1024xf32>
      %12 = arith.addf %9, %11 : vector<64x1024xf32>
      %c0_7 = arith.constant 0 : index
      %c0_8 = arith.constant 0 : index
      %13 = vector.load %arg4[%c0_7, %c0_8] : memref<64x1024xf32, #tpu.memory_space<vmem>>, vector<64x1024xf32>
      tpu.vector_store %arg4[%c0_7, %c0_8], %12 {strides = array<i32>} : memref<64x1024xf32, #tpu.memory_space<vmem>>, vector<64x1024xf32>,
    } else {
    }
    return
  }
  func.func @transform_0(%arg0: i32, %arg1: i32) -> (i32, i32) {
    %c1_i32 = arith.constant 1 : i32
    %0 = arith.subi %c1_i32, %arg0 : i32
    %1 = arith.muli %arg1, %0 : i32
    %c1_i32_0 = arith.constant 1 : i32
    %2 = arith.muli %c1_i32_0, %arg0 : i32
    %3 = arith.addi %1, %2 : i32
    %c0_i32 = arith.constant 0 : i32
    %c0_i32_1 = arith.constant 0 : i32
    return %c0_i32, %3 : i32, i32
  }
  func.func @transform_1(%arg0: i32, %arg1: i32) -> (i32, i32) {
    %0 = arith.muli %arg1, %arg0 : i32
    %c0_i32 = arith.constant 0 : i32
    %c0_i32_0 = arith.constant 0 : i32
    return %c0_i32, %0 : i32, i32
  }
  func.func @transform_2(%arg0: i32, %arg1: i32) -> (i32, i32) {
    %0 = arith.muli %arg1, %arg0 : i32
    %c0_i32 = arith.constant 0 : i32
    %c0_i32_0 = arith.constant 0 : i32
    return %c0_i32, %0 : i32, i32
  }
}

</mosaic_0001>

<llo_original>
// kernel: tpu_custom_call.1
$region0: #{tpu_custom_call.1}
  #allocation0 [shape = 'u32[]', space=smem, size = 0x4, offset = 0x4, fixed_abs, tag = 'smem constant byte address 0x4 - core index']
  #allocation1 [shape = 'u32[144,128]{1,0:T(1,128)}', space=vmem, size = 0x12000, scoped, tag = 'internal scratch']
  #allocation2 [shape = 'f32[1,1]{1,0:T(1,128)}', space=vmem, size = 0x200, scoped, tag = 'scratch operand']
  #allocation3 [shape = 'f32[1,1]{1,0:T(1,128)}', space=vmem, size = 0x200, scoped, tag = 'scratch operand']
  #allocation4 [shape = 'f32[1,1]{1,0:T(1,128)}', space=vmem, size = 0x200, scoped, tag = 'scratch operand']
  %s0 = inlined_call_operand.hbm [shape: f32[64,2048], index: 0, kind: input, shape index: {}]
  %s1 = inlined_call_operand.hbm [shape: f32[64,2048], index: 1, kind: input, shape index: {}]
  %s2 = inlined_call_operand.hbm [shape: f32[64,2048], index: 2, kind: output, shape index: {}]
  %s3 = sld [smem:[#allocation0]]
  $region65: #{tpu_custom_call.1} parent=0
    _
  %s5 = ssub.s32 1, %s3
  %s6 = scalar_select 0, %s5, %s3
  $region1: #{tpu_custom_call.1} parent=0
    #allocation5 [shape = 'u8[524288]{0}', space=vmem, size = 0x80000, scoped, tag = 'input window, operand 0']
    #allocation6 [shape = 's32[2]{0}', space=sflag, size = 0x8, scoped, tag = 'scoped memory for tpu_custom_call.1']
    #allocation7 [shape = 's32[2]{0}', space=sflag, size = 0x8, scoped, tag = 'scoped memory for tpu_custom_call.1']
    #allocation8 [shape = 'u8[524288]{0}', space=vmem, size = 0x80000, scoped, tag = 'input window, operand 1']
    #allocation9 [shape = 's32[2]{0}', space=sflag, size = 0x8, scoped, tag = 'scoped memory for tpu_custom_call.1']
    #allocation10 [shape = 'u8[524288]{0}', space=vmem, size = 0x80000, scoped, tag = 'output window, operand 0']
    %7 = vsyncpa [#allocation6], 0
    %s8 = scalar_lea.sflag [#allocation6], 1
    %9 = vsyncpa %s8, 0
    %10 = vsyncpa [#allocation9], 0
    %s11 = scalar_lea.sflag [#allocation9], 1
    %12 = vsyncpa %s11, 0
    %13 = vsyncpa [#allocation7], 0
    %s14 = scalar_lea.sflag [#allocation7], 1
    %15 = vsyncpa %s14, 0
    loop: start=0, step=1, limit=6
    $region2: #{tpu_custom_call.1} parent=1 // loop_pre_header
      _
    $region3: #{tpu_custom_call.1} parent=1 // loop_header
      %s17 = sphi 0, %s21
      %p18 = scmp.ge.s32.totalorder %s17, 6
      %s24 = sphi 0, %s36
      %s25 = sphi 0, %s32
      %s26 = sphi 0, %s24
      %s27 = sphi 0, %s25
      %s28 = sphi 0, %s26
      %s29 = sphi 0, %s27
      %s45 = sphi 0, %s47
      %s48 = sphi 0, %s45
      %s49 = sphi 0, %s48
      %s65 = sphi 0, %s49
      %s73 = sphi 0, %s75
      %s76 = sphi 0, %s73
      %s77 = sphi 0, %s76
      %s93 = sphi 0, %s77
      %s101 = sphi 0, %s103
      %s104 = sphi 0, %s101
      %s105 = sphi 0, %s104
      %s121 = sphi 0, %s105
    $region4: #{tpu_custom_call.1} parent=1 // loop_header_branch
      %20 = sbr.rel (%p18) target = $region8
    $region5: #{tpu_custom_call.1} parent=1 // loop_body
      %s22 = ssub.s32 %s17, 1
      %s23 = ssub.s32 %s17, 2
      %s30 = sadd.s32 1, %s25
      %p31 = scmp.ge.s32.totalorder %s30, 2
      %s32 = scalar_select %p31, 0, %s30
      %s33 = sadd.s32 1, %s24
      %s34 = scalar_select %p31, %s33, %s24
      %p35 = scmp.ge.s32.totalorder %s34, 2
      %s36 = scalar_select %p35, 0, %s34
      %s37 = ssub.s32 1, %s24
      %s38 = smul.u32 %s25, %s37
      %s39 = sadd.s32 %s38, %s24
      %s40 = ssub.s32 1, %s36
      %s41 = smul.u32 %s32, %s40
      %s42 = sadd.s32 %s41, %s36
      %s43 = ssub.s32 %s39, %s42
      %p44 = scmp.eq.s32.totalorder %s43, 0
      %s46 = sadd.s32 %s45, 1
      %s47 = scalar_select %p44, %s45, %s46
      %p50 = pneg %p44
      %p51 = scmp.eq.s32.totalorder %s17, 3
      %p52 = por %p50, %p51
      %p53 = scmp.ne.s32.totalorder %s45, %s48
      %p54 = scmp.eq.s32.totalorder %s17, 0
      %p55 = por %p53, %p54
      %p56 = scmp.ne.s32.totalorder %s45, %s48
      %p57 = scmp.eq.s32.totalorder %s22, 3
      %p58 = por %p56, %p57
      %p59 = scmp.ne.s32.totalorder %s48, %s49
      %p60 = scmp.eq.s32.totalorder %s22, 0
      %p61 = por %p59, %p60
      %p62 = scmp.ne.s32.totalorder %s48, %s49
      %p63 = scmp.eq.s32.totalorder %s23, 3
      %p64 = por %p62, %p63
      %p66 = scmp.ne.s32.totalorder %s49, %s65
      %p67 = scmp.eq.s32.totalorder %s23, 0
      %p68 = por %p66, %p67
      %s69 = smul.u32 %s25, %s24
      %s70 = smul.u32 %s32, %s36
      %s71 = ssub.s32 %s69, %s70
      %p72 = scmp.eq.s32.totalorder %s71, 0
      %s74 = sadd.s32 %s73, 1
      %s75 = scalar_select %p72, %s73, %s74
      %p78 = pneg %p72
      %p79 = scmp.eq.s32.totalorder %s17, 3
      %p80 = por %p78, %p79
      %p81 = scmp.ne.s32.totalorder %s73, %s76
      %p82 = scmp.eq.s32.totalorder %s17, 0
      %p83 = por %p81, %p82
      %p84 = scmp.ne.s32.totalorder %s73, %s76
      %p85 = scmp.eq.s32.totalorder %s22, 3
      %p86 = por %p84, %p85
      %p87 = scmp.ne.s32.totalorder %s76, %s77
      %p88 = scmp.eq.s32.totalorder %s22, 0
      %p89 = por %p87, %p88
      %p90 = scmp.ne.s32.totalorder %s76, %s77
      %p91 = scmp.eq.s32.totalorder %s23, 3
      %p92 = por %p90, %p91
      %p94 = scmp.ne.s32.totalorder %s77, %s93
      %p95 = scmp.eq.s32.totalorder %s23, 0
      %p96 = por %p94, %p95
      %s97 = smul.u32 %s25, %s24
      %s98 = smul.u32 %s32, %s36
      %s99 = ssub.s32 %s97, %s98
      %p100 = scmp.eq.s32.totalorder %s99, 0
      %s102 = sadd.s32 %s101, 1
      %s103 = scalar_select %p100, %s101, %s102
      %p106 = pneg %p100
      %p107 = scmp.eq.s32.totalorder %s17, 3
      %p108 = por %p106, %p107
      %p109 = scmp.ne.s32.totalorder %s101, %s104
      %p110 = scmp.eq.s32.totalorder %s17, 0
      %p111 = por %p109, %p110
      %p112 = scmp.ne.s32.totalorder %s101, %s104
      %p113 = scmp.eq.s32.totalorder %s22, 3
      %p114 = por %p112, %p113
      %p115 = scmp.ne.s32.totalorder %s104, %s105
      %p116 = scmp.eq.s32.totalorder %s22, 0
      %p117 = por %p115, %p116
      %p118 = scmp.ne.s32.totalorder %s104, %s105
      %p119 = scmp.eq.s32.totalorder %s23, 3
      %p120 = por %p118, %p119
      %p122 = scmp.ne.s32.totalorder %s105, %s121
      %p123 = scmp.eq.s32.totalorder %s23, 0
      %p124 = por %p122, %p123
      %p125 = scmp.le.s32.totalorder 1, %s17
      %p126 = scmp.lt.s32.totalorder %s17, 5
      %p127 = pnand %p125, %p126
      %p128 = pneg %p127
      // Predicated region
      $region9: #{tpu_custom_call.1} parent=5 // pred_check
        _
      $region10: #{tpu_custom_call.1} parent=5 // pred_check_branch
        %130 = sbr.rel (%p127) target = $region12
      $region11: #{tpu_custom_call.1} parent=5 // pred_region
        %s131 = ssub.s32 %s17, 1
      $region12: #{tpu_custom_call.1} parent=5 // pred_fallthru
        _
      %p132 = scmp.lt.s32.totalorder %s17, 4
      // Predicated region
      $region13: #{tpu_custom_call.1} parent=5 // pred_check
        %p133 = pneg %p132
      $region14: #{tpu_custom_call.1} parent=5 // pred_check_branch
        %135 = sbr.rel (%p133) target = $region16
      $region15: #{tpu_custom_call.1} parent=5 // pred_region
        // Predicated region
        $region17: #{tpu_custom_call.1} parent=15 // pred_check
          %p136 = pneg %p55
        $region18: #{tpu_custom_call.1} parent=15 // pred_check_branch
          %138 = sbr.rel (%p136) target = $region20
        $region19: #{tpu_custom_call.1} parent=15 // pred_region
          %s139 = sand.u32 %s45, 1
          %s140 = scalar_lea.sflag [#allocation6], %s139
          %s141 = sand.u32 %s45, 1
          %s142 = smul.addr %s141, 512
          %s143 = scalar_lea.vmem [#allocation5], %s142
          %s144 = ssub.s32 1, %s24
          %s145 = smul.u32 %s25, %s144
          %s146 = sadd.s32 %s145, %s24
          %s147 = smul.u32 8, %s146
          %s149 = ssub.s32 8192, 8192
          %150 = vsyncadd %s140, %s149
          %s151 = smul.addr %s147, 128
          %s152 = scalar_lea.hbm %s0, %s151
          %s153 = sshll.u32 %s143, 4
          %s154 = int_to_ptr.vmem [resolvable:$true] %s153
          %159 = dma.hbm_to_vmem [thread:$0]  %s152, 8192, %s154, %s140, 2048, 1024, 64
        $region20: #{tpu_custom_call.1} parent=15 // pred_fallthru
          _
        // Predicated region
        $region21: #{tpu_custom_call.1} parent=15 // pred_check
          %p160 = pneg %p83
        $region22: #{tpu_custom_call.1} parent=15 // pred_check_branch
          %162 = sbr.rel (%p160) target = $region24
        $region23: #{tpu_custom_call.1} parent=15 // pred_region
          %s163 = sand.u32 %s73, 1
          %s164 = scalar_lea.sflag [#allocation9], %s163
          %s165 = sand.u32 %s73, 1
          %s166 = smul.addr %s165, 512
          %s167 = scalar_lea.vmem [#allocation8], %s166
          %s168 = smul.u32 %s25, %s24
          %s169 = smul.u32 8, %s168
          %s171 = ssub.s32 8192, 8192
          %172 = vsyncadd %s164, %s171
          %s173 = smul.addr %s169, 128
          %s174 = scalar_lea.hbm %s1, %s173
          %s175 = sshll.u32 %s167, 4
          %s176 = int_to_ptr.vmem [resolvable:$true] %s175
          %181 = dma.hbm_to_vmem [thread:$0]  %s174, 8192, %s176, %s164, 2048, 1024, 64
        $region24: #{tpu_custom_call.1} parent=15 // pred_fallthru
          _
      $region16: #{tpu_custom_call.1} parent=5 // pred_fallthru
        _
      %p182 = scmp.le.s32.totalorder 1, %s17
      %p183 = scmp.lt.s32.totalorder %s17, 5
      %p184 = pnand %p182, %p183
      %p185 = pneg %p184
      // Predicated region
      $region25: #{tpu_custom_call.1} parent=5 // pred_check
        _
      $region26: #{tpu_custom_call.1} parent=5 // pred_check_branch
        %187 = sbr.rel (%p184) target = $region28
      $region27: #{tpu_custom_call.1} parent=5 // pred_region
        %s188 = ssub.s32 %s17, 1
        %s189 = sand.u32 %s48, 1
        %s190 = scalar_lea.sflag [#allocation6], %s189
        %s191 = sand.u32 %s48, 1
        %s192 = smul.addr %s191, 512
        %s193 = scalar_lea.vmem [#allocation5], %s192
        // Predicated region
        $region29: #{tpu_custom_call.1} parent=27 // pred_check
          %p194 = pneg %p61
        $region30: #{tpu_custom_call.1} parent=27 // pred_check_branch
          %196 = sbr.rel (%p194) target = $region32
        $region31: #{tpu_custom_call.1} parent=27 // pred_region
          %197 = dma.done %s190, 8192
        $region32: #{tpu_custom_call.1} parent=27 // pred_fallthru
          _
        %s198 = sand.u32 %s76, 1
        %s199 = scalar_lea.sflag [#allocation9], %s198
        %s200 = sand.u32 %s76, 1
        %s201 = smul.addr %s200, 512
        %s202 = scalar_lea.vmem [#allocation8], %s201
        // Predicated region
        $region33: #{tpu_custom_call.1} parent=27 // pred_check
          %p203 = pneg %p89
        $region34: #{tpu_custom_call.1} parent=27 // pred_check_branch
          %205 = sbr.rel (%p203) target = $region36
        $region35: #{tpu_custom_call.1} parent=27 // pred_region
          %206 = dma.done %s199, 8192
        $region36: #{tpu_custom_call.1} parent=27 // pred_fallthru
          _
        %s207 = sand.u32 %s48, 1
        %s208 = scalar_lea.sflag [#allocation6], %s207
        %s209 = sand.u32 %s48, 1
        %s210 = smul.addr %s209, 512
        %s211 = scalar_lea.vmem [#allocation5], %s210
        %p212 = pneg %p61
        %p213 = pneg %p58
        %s214 = sand.u32 %s76, 1
        %s215 = scalar_lea.sflag [#allocation9], %s214
        %s216 = sand.u32 %s76, 1
        %s217 = smul.addr %s216, 512
        %s218 = scalar_lea.vmem [#allocation8], %s217
        %p219 = pneg %p89
        %p220 = pneg %p86
        %p221 = pneg %p117
        %p222 = pneg %p114
        %s223 = sand.u32 %s104, 1
        %s224 = scalar_lea.sflag [#allocation7], %s223
        %s225 = sand.u32 %s104, 1
        %s226 = smul.addr %s225, 512
        %s227 = scalar_lea.vmem [#allocation10], %s226
        %s228 = ssub.s32 1, %s26
        %s229 = smul.u32 %s27, %s228
        %s230 = sadd.s32 %s229, %s26
        %s231 = smul.u32 8, %s230
        %s232 = smul.u32 %s27, %s26
        %s233 = smul.u32 8, %s232
        %s234 = smul.u32 %s27, %s26
        %s235 = smul.u32 8, %s234
        %p236 = scmp.eq.s32.totalorder %s26, 0
        // Predicated region
        $region37: #{tpu_custom_call.1} parent=27 // pred_check
          %p237 = pneg %p236
        $region38: #{tpu_custom_call.1} parent=27 // pred_check_branch
          %239 = sbr.rel (%p237) target = $region40
        $region39: #{tpu_custom_call.1} parent=27 // pred_region
          %v240 = vld [vmem:[%s193] sm:$0xff]
          %v241 = vld [vmem:[%s193 + $0x8] sm:$0xff]
          %v242 = vld [vmem:[%s193 + $0x10] sm:$0xff]
          %v243 = vld [vmem:[%s193 + $0x18] sm:$0xff]
          %v244 = vld [vmem:[%s193 + $0x20] sm:$0xff]
          %v245 = vld [vmem:[%s193 + $0x28] sm:$0xff]
          %v246 = vld [vmem:[%s193 + $0x30] sm:$0xff]
          %v247 = vld [vmem:[%s193 + $0x38] sm:$0xff]
          %v248 = vld [vmem:[%s193 + $0x40] sm:$0xff]
          %v249 = vld [vmem:[%s193 + $0x48] sm:$0xff]
          %v250 = vld [vmem:[%s193 + $0x50] sm:$0xff]
          %v251 = vld [vmem:[%s193 + $0x58] sm:$0xff]
          %v252 = vld [vmem:[%s193 + $0x60] sm:$0xff]
          %v253 = vld [vmem:[%s193 + $0x68] sm:$0xff]
          %v254 = vld [vmem:[%s193 + $0x70] sm:$0xff]
          %v255 = vld [vmem:[%s193 + $0x78] sm:$0xff]
          %v256 = vld [vmem:[%s193 + $0x80] sm:$0xff]
          %v257 = vld [vmem:[%s193 + $0x88] sm:$0xff]
          %v258 = vld [vmem:[%s193 + $0x90] sm:$0xff]
          %v259 = vld [vmem:[%s193 + $0x98] sm:$0xff]
          %v260 = vld [vmem:[%s193 + $0xa0] sm:$0xff]
          %v261 = vld [vmem:[%s193 + $0xa8] sm:$0xff]
          %v262 = vld [vmem:[%s193 + $0xb0] sm:$0xff]
          %v263 = vld [vmem:[%s193 + $0xb8] sm:$0xff]
          %v264 = vld [vmem:[%s193 + $0xc0] sm:$0xff]
          %v265 = vld [vmem:[%s193 + $0xc8] sm:$0xff]
          %v266 = vld [vmem:[%s193 + $0xd0] sm:$0xff]
          %v267 = vld [vmem:[%s193 + $0xd8] sm:$0xff]
          %v268 = vld [vmem:[%s193 + $0xe0] sm:$0xff]
          %v269 = vld [vmem:[%s193 + $0xe8] sm:$0xff]
          %v270 = vld [vmem:[%s193 + $0xf0] sm:$0xff]
          %v271 = vld [vmem:[%s193 + $0xf8] sm:$0xff]
          %v272 = vld [vmem:[%s193 + $0x100] sm:$0xff]
          %v273 = vld [vmem:[%s193 + $0x108] sm:$0xff]
          %v274 = vld [vmem:[%s193 + $0x110] sm:$0xff]
          %v275 = vld [vmem:[%s193 + $0x118] sm:$0xff]
          %v276 = vld [vmem:[%s193 + $0x120] sm:$0xff]
          %v277 = vld [vmem:[%s193 + $0x128] sm:$0xff]
          %v278 = vld [vmem:[%s193 + $0x130] sm:$0xff]
          %v279 = vld [vmem:[%s193 + $0x138] sm:$0xff]
          %v280 = vld [vmem:[%s193 + $0x140] sm:$0xff]
          %v281 = vld [vmem:[%s193 + $0x148] sm:$0xff]
          %v282 = vld [vmem:[%s193 + $0x150] sm:$0xff]
          %v283 = vld [vmem:[%s193 + $0x158] sm:$0xff]
          %v284 = vld [vmem:[%s193 + $0x160] sm:$0xff]
          %v285 = vld [vmem:[%s193 + $0x168] sm:$0xff]
          %v286 = vld [vmem:[%s193 + $0x170] sm:$0xff]
          %v287 = vld [vmem:[%s193 + $0x178] sm:$0xff]
          %v288 = vld [vmem:[%s193 + $0x180] sm:$0xff]
          %v289 = vld [vmem:[%s193 + $0x188] sm:$0xff]
          %v290 = vld [vmem:[%s193 + $0x190] sm:$0xff]
          %v291 = vld [vmem:[%s193 + $0x198] sm:$0xff]
          %v292 = vld [vmem:[%s193 + $0x1a0] sm:$0xff]
          %v293 = vld [vmem:[%s193 + $0x1a8] sm:$0xff]
          %v294 = vld [vmem:[%s193 + $0x1b0] sm:$0xff]
          %v295 = vld [vmem:[%s193 + $0x1b8] sm:$0xff]
          %v296 = vld [vmem:[%s193 + $0x1c0] sm:$0xff]
          %v297 = vld [vmem:[%s193 + $0x1c8] sm:$0xff]
          %v298 = vld [vmem:[%s193 + $0x1d0] sm:$0xff]
          %v299 = vld [vmem:[%s193 + $0x1d8] sm:$0xff]
          %v300 = vld [vmem:[%s193 + $0x1e0] sm:$0xff]
          %v301 = vld [vmem:[%s193 + $0x1e8] sm:$0xff]
          %v302 = vld [vmem:[%s193 + $0x1f0] sm:$0xff]
          %v303 = vld [vmem:[%s193 + $0x1f8] sm:$0xff]
          %s304 = smul.u32 %s27, 1024
          %v305 = vlaneseq
          %v306 = vand.u32 %v305, 127
          %v307 = vadd.s32 %v306, 128
          %v308 = vadd.s32 %v306, 256
          %v309 = vadd.s32 %v306, 384
          %v310 = vadd.s32 %v306, 512
          %v311 = vadd.s32 %v306, 640
          %v312 = vadd.s32 %v306, 768
          %v313 = vadd.s32 %v306, 896
          %v314 = vstv %s304
          %v315 = vadd.s32 %v314, %v306
          %v316 = vadd.s32 %v314, %v307
          %v317 = vadd.s32 %v314, %v308
          %v318 = vadd.s32 %v314, %v309
          %v319 = vadd.s32 %v314, %v310
          %v320 = vadd.s32 %v314, %v311
          %v321 = vadd.s32 %v314, %v312
          %v322 = vadd.s32 %v314, %v313
          %vm323 = vcmp.lt.s32.totalorder %v315, 2048
          %vm324 = vcmp.lt.s32.totalorder %v316, 2048
          %vm325 = vcmp.lt.s32.totalorder %v317, 2048
          %vm326 = vcmp.lt.s32.totalorder %v318, 2048
          %vm327 = vcmp.lt.s32.totalorder %v319, 2048
          %vm328 = vcmp.lt.s32.totalorder %v320, 2048
          %vm329 = vcmp.lt.s32.totalorder %v321, 2048
          %vm330 = vcmp.lt.s32.totalorder %v322, 2048
          %v331 = vsel %vm323, 1, 0
          %v332 = vsel %vm324, 1, 0
          %v333 = vsel %vm325, 1, 0
          %v334 = vsel %vm326, 1, 0
          %v335 = vsel %vm327, 1, 0
          %v336 = vsel %vm328, 1, 0
          %v337 = vsel %vm329, 1, 0
          %v338 = vsel %vm330, 1, 0
          %v339 = vcvt.s32.f32 %v331
          %v340 = vcvt.s32.f32 %v332
          %v341 = vcvt.s32.f32 %v333
          %v342 = vcvt.s32.f32 %v334
          %v343 = vcvt.s32.f32 %v335
          %v344 = vcvt.s32.f32 %v336
          %v345 = vcvt.s32.f32 %v337
          %v346 = vcvt.s32.f32 %v338
          %p347 = scmp.eq.s32.totalorder %s27, 0
          // Predicated region
          $region41: #{tpu_custom_call.1} parent=39 // pred_check
            %p348 = pneg %p347
          $region42: #{tpu_custom_call.1} parent=39 // pred_check_branch
            %350 = sbr.rel (%p348) target = $region44
          $region43: #{tpu_custom_call.1} parent=39 // pred_region
            %v351 = vadd.f32 %v339, %v340
            %v352 = vadd.f32 %v351, %v341
            %v353 = vadd.f32 %v352, %v342
            %v354 = vadd.f32 %v353, %v343
            %v355 = vadd.f32 %v354, %v344
            %v356 = vadd.f32 %v355, %v345
            %v357 = vadd.f32 %v356, %v346
            %v358 = vadd.f32 %v357, %v339
            %v359 = vadd.f32 %v358, %v340
            %v360 = vadd.f32 %v359, %v341
            %v361 = vadd.f32 %v360, %v342
            %v362 = vadd.f32 %v361, %v343
            %v363 = vadd.f32 %v362, %v344
            %v364 = vadd.f32 %v363, %v345
            %v365 = vadd.f32 %v364, %v346
            %v366 = vadd.f32 %v365, %v339
            %v367 = vadd.f32 %v366, %v340
            %v368 = vadd.f32 %v367, %v341
            %v369 = vadd.f32 %v368, %v342
            %v370 = vadd.f32 %v369, %v343
            %v371 = vadd.f32 %v370, %v344
            %v372 = vadd.f32 %v371, %v345
            %v373 = vadd.f32 %v372, %v346
            %v374 = vadd.f32 %v373, %v339
            %v375 = vadd.f32 %v374, %v340
            %v376 = vadd.f32 %v375, %v341
            %v377 = vadd.f32 %v376, %v342
            %v378 = vadd.f32 %v377, %v343
            %v379 = vadd.f32 %v378, %v344
            %v380 = vadd.f32 %v379, %v345
            %v381 = vadd.f32 %v380, %v346
            %v382 = vadd.f32 %v381, %v339
            %v383 = vadd.f32 %v382, %v340
            %v384 = vadd.f32 %v383, %v341
            %v385 = vadd.f32 %v384, %v342
            %v386 = vadd.f32 %v385, %v343
            %v387 = vadd.f32 %v386, %v344
            %v388 = vadd.f32 %v387, %v345
            %v389 = vadd.f32 %v388, %v346
            %v390 = vadd.f32 %v389, %v339
            %v391 = vadd.f32 %v390, %v340
            %v392 = vadd.f32 %v391, %v341
            %v393 = vadd.f32 %v392, %v342
            %v394 = vadd.f32 %v393, %v343
            %v395 = vadd.f32 %v394, %v344
            %v396 = vadd.f32 %v395, %v345
            %v397 = vadd.f32 %v396, %v346
            %v398 = vadd.f32 %v397, %v339
            %v399 = vadd.f32 %v398, %v340
            %v400 = vadd.f32 %v399, %v341
            %v401 = vadd.f32 %v400, %v342
            %v402 = vadd.f32 %v401, %v343
            %v403 = vadd.f32 %v402, %v344
            %v404 = vadd.f32 %v403, %v345
            %v405 = vadd.f32 %v404, %v346
            %v406 = vadd.f32 %v405, %v339
            %v407 = vadd.f32 %v406, %v340
            %v408 = vadd.f32 %v407, %v341
            %v409 = vadd.f32 %v408, %v342
            %v410 = vadd.f32 %v409, %v343
            %v411 = vadd.f32 %v410, %v344
            %v412 = vadd.f32 %v411, %v345
            %v413 = vadd.f32 %v412, %v346
            %414 = vadd.xlane.f32.xlu0 %v413
            %v415 = vpop.xlane.xlu0 %414
            %v416 = vrot.slane %v415, 4
            %v417 = vadd.f32 %v415, %v416
            %v418 = vrot.slane %v417, 2
            %v419 = vadd.f32 %v417, %v418
            %v420 = vrot.slane %v419, 1
            %v421 = vadd.f32 %v419, %v420
            %s422 = vtos %v421
            %v423 = vstv %s422
            %v424 = vmul.f32 %v240, %v339
            %v425 = vmul.f32 %v241, %v340
            %v426 = vmul.f32 %v242, %v341
            %v427 = vmul.f32 %v243, %v342
            %v428 = vmul.f32 %v244, %v343
            %v429 = vmul.f32 %v245, %v344
            %v430 = vmul.f32 %v246, %v345
            %v431 = vmul.f32 %v247, %v346
            %v432 = vmul.f32 %v248, %v339
            %v433 = vmul.f32 %v249, %v340
            %v434 = vmul.f32 %v250, %v341
            %v435 = vmul.f32 %v251, %v342
            %v436 = vmul.f32 %v252, %v343
            %v437 = vmul.f32 %v253, %v344
            %v438 = vmul.f32 %v254, %v345
            %v439 = vmul.f32 %v255, %v346
            %v440 = vmul.f32 %v256, %v339
            %v441 = vmul.f32 %v257, %v340
            %v442 = vmul.f32 %v258, %v341
            %v443 = vmul.f32 %v259, %v342
            %v444 = vmul.f32 %v260, %v343
            %v445 = vmul.f32 %v261, %v344
            %v446 = vmul.f32 %v262, %v345
            %v447 = vmul.f32 %v263, %v346
            %v448 = vmul.f32 %v264, %v339
            %v449 = vmul.f32 %v265, %v340
            %v450 = vmul.f32 %v266, %v341
            %v451 = vmul.f32 %v267, %v342
            %v452 = vmul.f32 %v268, %v343
            %v453 = vmul.f32 %v269, %v344
            %v454 = vmul.f32 %v270, %v345
            %v455 = vmul.f32 %v271, %v346
            %v456 = vmul.f32 %v272, %v339
            %v457 = vmul.f32 %v273, %v340
            %v458 = vmul.f32 %v274, %v341
            %v459 = vmul.f32 %v275, %v342
            %v460 = vmul.f32 %v276, %v343
            %v461 = vmul.f32 %v277, %v344
            %v462 = vmul.f32 %v278, %v345
            %v463 = vmul.f32 %v279, %v346
            %v464 = vmul.f32 %v280, %v339
            %v465 = vmul.f32 %v281, %v340
            %v466 = vmul.f32 %v282, %v341
            %v467 = vmul.f32 %v283, %v342
            %v468 = vmul.f32 %v284, %v343
            %v469 = vmul.f32 %v285, %v344
            %v470 = vmul.f32 %v286, %v345
            %v471 = vmul.f32 %v287, %v346
            %v472 = vmul.f32 %v288, %v339
            %v473 = vmul.f32 %v289, %v340
            %v474 = vmul.f32 %v290, %v341
            %v475 = vmul.f32 %v291, %v342
            %v476 = vmul.f32 %v292, %v343
            %v477 = vmul.f32 %v293, %v344
            %v478 = vmul.f32 %v294, %v345
            %v479 = vmul.f32 %v295, %v346
            %v480 = vmul.f32 %v296, %v339
            %v481 = vmul.f32 %v297, %v340
            %v482 = vmul.f32 %v298, %v341
            %v483 = vmul.f32 %v299, %v342
            %v484 = vmul.f32 %v300, %v343
            %v485 = vmul.f32 %v301, %v344
            %v486 = vmul.f32 %v302, %v345
            %v487 = vmul.f32 %v303, %v346
            %v488 = vadd.f32 %v424, %v425
            %v489 = vadd.f32 %v488, %v426
            %v490 = vadd.f32 %v489, %v427
            %v491 = vadd.f32 %v490, %v428
            %v492 = vadd.f32 %v491, %v429
            %v493 = vadd.f32 %v492, %v430
            %v494 = vadd.f32 %v493, %v431
            %v495 = vadd.f32 %v494, %v432
            %v496 = vadd.f32 %v495, %v433
            %v497 = vadd.f32 %v496, %v434
            %v498 = vadd.f32 %v497, %v435
            %v499 = vadd.f32 %v498, %v436
            %v500 = vadd.f32 %v499, %v437
            %v501 = vadd.f32 %v500, %v438
            %v502 = vadd.f32 %v501, %v439
            %v503 = vadd.f32 %v502, %v440
            %v504 = vadd.f32 %v503, %v441
            %v505 = vadd.f32 %v504, %v442
            %v506 = vadd.f32 %v505, %v443
            %v507 = vadd.f32 %v506, %v444
            %v508 = vadd.f32 %v507, %v445
            %v509 = vadd.f32 %v508, %v446
            %v510 = vadd.f32 %v509, %v447
            %v511 = vadd.f32 %v510, %v448
            %v512 = vadd.f32 %v511, %v449
            %v513 = vadd.f32 %v512, %v450
            %v514 = vadd.f32 %v513, %v451
            %v515 = vadd.f32 %v514, %v452
            %v516 = vadd.f32 %v515, %v453
            %v517 = vadd.f32 %v516, %v454
            %v518 = vadd.f32 %v517, %v455
            %v519 = vadd.f32 %v518, %v456
            %v520 = vadd.f32 %v519, %v457
            %v521 = vadd.f32 %v520, %v458
            %v522 = vadd.f32 %v521, %v459
            %v523 = vadd.f32 %v522, %v460
            %v524 = vadd.f32 %v523, %v461
            %v525 = vadd.f32 %v524, %v462
            %v526 = vadd.f32 %v525, %v463
            %v527 = vadd.f32 %v526, %v464
            %v528 = vadd.f32 %v527, %v465
            %v529 = vadd.f32 %v528, %v466
            %v530 = vadd.f32 %v529, %v467
            %v531 = vadd.f32 %v530, %v468
            %v532 = vadd.f32 %v531, %v469
            %v533 = vadd.f32 %v532, %v470
            %v534 = vadd.f32 %v533, %v471
            %v535 = vadd.f32 %v534, %v472
            %v536 = vadd.f32 %v535, %v473
            %v537 = vadd.f32 %v536, %v474
            %v538 = vadd.f32 %v537, %v475
            %v539 = vadd.f32 %v538, %v476
            %v540 = vadd.f32 %v539, %v477
            %v541 = vadd.f32 %v540, %v478
            %v542 = vadd.f32 %v541, %v479
            %v543 = vadd.f32 %v542, %v480
            %v544 = vadd.f32 %v543, %v481
            %v545 = vadd.f32 %v544, %v482
            %v546 = vadd.f32 %v545, %v483
            %v547 = vadd.f32 %v546, %v484
            %v548 = vadd.f32 %v547, %v485
            %v549 = vadd.f32 %v548, %v486
            %v550 = vadd.f32 %v549, %v487
            %551 = vadd.xlane.f32.xlu0 %v550
            %v552 = vpop.xlane.xlu0 %551
            %v553 = vrot.slane %v552, 4
            %v554 = vadd.f32 %v552, %v553
            %v555 = vrot.slane %v554, 2
            %v556 = vadd.f32 %v554, %v555
            %v557 = vrot.slane %v556, 1
            %v558 = vadd.f32 %v556, %v557
            %s559 = vtos %v558
            %v560 = vstv %s559
            %v561 = vrcp.pop %v423
            %v562 = vmul.f32 %v560, %v561
            %vm563 = vcmask 0
            %564 = vst.msk [vmem:[#allocation4] sm:$0x1] %vm563, %v562
            %565 = vst.msk [vmem:[#allocation2] sm:$0x1] %vm563, 0.0
            %566 = vst.msk [vmem:[#allocation3] sm:$0x1] %vm563, 0.0
          $region44: #{tpu_custom_call.1} parent=39 // pred_fallthru
            _
          %v567 = vld [vmem:[#allocation4] sm:$0x1]
          %v569 = vlaneseq
          %v570 = vshrl.u32 %v569, 7
          %v571 = vsub.s32 0, %v570
          %v572 = vrot.slane %v567, %v571
          %573 = vset.pattern.permute.xlu0 0
          %574 = vperm.xlu0 %573, %v572
          %v575 = vpop.permute.xlu0 %574
          %v577 = vsub.f32 %v240, %v575
          %v578 = vsub.f32 %v241, %v575
          %v579 = vsub.f32 %v242, %v575
          %v580 = vsub.f32 %v243, %v575
          %v581 = vsub.f32 %v244, %v575
          %v582 = vsub.f32 %v245, %v575
          %v583 = vsub.f32 %v246, %v575
          %v584 = vsub.f32 %v247, %v575
          %v585 = vsub.f32 %v248, %v575
          %v586 = vsub.f32 %v249, %v575
          %v587 = vsub.f32 %v250, %v575
          %v588 = vsub.f32 %v251, %v575
          %v589 = vsub.f32 %v252, %v575
          %v590 = vsub.f32 %v253, %v575
          %v591 = vsub.f32 %v254, %v575
          %v592 = vsub.f32 %v255, %v575
          %v593 = vsub.f32 %v256, %v575
          %v594 = vsub.f32 %v257, %v575
          %v595 = vsub.f32 %v258, %v575
          %v596 = vsub.f32 %v259, %v575
          %v597 = vsub.f32 %v260, %v575
          %v598 = vsub.f32 %v261, %v575
          %v599 = vsub.f32 %v262, %v575
          %v600 = vsub.f32 %v263, %v575
          %v601 = vsub.f32 %v264, %v575
          %v602 = vsub.f32 %v265, %v575
          %v603 = vsub.f32 %v266, %v575
          %v604 = vsub.f32 %v267, %v575
          %v605 = vsub.f32 %v268, %v575
          %v606 = vsub.f32 %v269, %v575
          %v607 = vsub.f32 %v270, %v575
          %v608 = vsub.f32 %v271, %v575
          %v609 = vsub.f32 %v272, %v575
          %v610 = vsub.f32 %v273, %v575
          %v611 = vsub.f32 %v274, %v575
          %v612 = vsub.f32 %v275, %v575
          %v613 = vsub.f32 %v276, %v575
          %v614 = vsub.f32 %v277, %v575
          %v615 = vsub.f32 %v278, %v575
          %v616 = vsub.f32 %v279, %v575
          %v617 = vsub.f32 %v280, %v575
          %v618 = vsub.f32 %v281, %v575
          %v619 = vsub.f32 %v282, %v575
          %v620 = vsub.f32 %v283, %v575
          %v621 = vsub.f32 %v284, %v575
          %v622 = vsub.f32 %v285, %v575
          %v623 = vsub.f32 %v286, %v575
          %v624 = vsub.f32 %v287, %v575
          %v625 = vsub.f32 %v288, %v575
          %v626 = vsub.f32 %v289, %v575
          %v627 = vsub.f32 %v290, %v575
          %v628 = vsub.f32 %v291, %v575
          %v629 = vsub.f32 %v292, %v575
          %v630 = vsub.f32 %v293, %v575
          %v631 = vsub.f32 %v294, %v575
          %v632 = vsub.f32 %v295, %v575
          %v633 = vsub.f32 %v296, %v575
          %v634 = vsub.f32 %v297, %v575
          %v635 = vsub.f32 %v298, %v575
          %v636 = vsub.f32 %v299, %v575
          %v637 = vsub.f32 %v300, %v575
          %v638 = vsub.f32 %v301, %v575
          %v639 = vsub.f32 %v302, %v575
          %v640 = vsub.f32 %v303, %v575
          %v641 = vmul.f32 %v577, %v339
          %v642 = vmul.f32 %v578, %v340
          %v643 = vmul.f32 %v579, %v341
          %v644 = vmul.f32 %v580, %v342
          %v645 = vmul.f32 %v581, %v343
          %v646 = vmul.f32 %v582, %v344
          %v647 = vmul.f32 %v583, %v345
          %v648 = vmul.f32 %v584, %v346
          %v649 = vmul.f32 %v585, %v339
          %v650 = vmul.f32 %v586, %v340
          %v651 = vmul.f32 %v587, %v341
          %v652 = vmul.f32 %v588, %v342
          %v653 = vmul.f32 %v589, %v343
          %v654 = vmul.f32 %v590, %v344
          %v655 = vmul.f32 %v591, %v345
          %v656 = vmul.f32 %v592, %v346
          %v657 = vmul.f32 %v593, %v339
          %v658 = vmul.f32 %v594, %v340
          %v659 = vmul.f32 %v595, %v341
          %v660 = vmul.f32 %v596, %v342
          %v661 = vmul.f32 %v597, %v343
          %v662 = vmul.f32 %v598, %v344
          %v663 = vmul.f32 %v599, %v345
          %v664 = vmul.f32 %v600, %v346
          %v665 = vmul.f32 %v601, %v339
          %v666 = vmul.f32 %v602, %v340
          %v667 = vmul.f32 %v603, %v341
          %v668 = vmul.f32 %v604, %v342
          %v669 = vmul.f32 %v605, %v343
          %v670 = vmul.f32 %v606, %v344
          %v671 = vmul.f32 %v607, %v345
          %v672 = vmul.f32 %v608, %v346
          %v673 = vmul.f32 %v609, %v339
          %v674 = vmul.f32 %v610, %v340
          %v675 = vmul.f32 %v611, %v341
          %v676 = vmul.f32 %v612, %v342
          %v677 = vmul.f32 %v613, %v343
          %v678 = vmul.f32 %v614, %v344
          %v679 = vmul.f32 %v615, %v345
          %v680 = vmul.f32 %v616, %v346
          %v681 = vmul.f32 %v617, %v339
          %v682 = vmul.f32 %v618, %v340
          %v683 = vmul.f32 %v619, %v341
          %v684 = vmul.f32 %v620, %v342
          %v685 = vmul.f32 %v621, %v343
          %v686 = vmul.f32 %v622, %v344
          %v687 = vmul.f32 %v623, %v345
          %v688 = vmul.f32 %v624, %v346
          %v689 = vmul.f32 %v625, %v339
          %v690 = vmul.f32 %v626, %v340
          %v691 = vmul.f32 %v627, %v341
          %v692 = vmul.f32 %v628, %v342
          %v693 = vmul.f32 %v629, %v343
          %v694 = vmul.f32 %v630, %v344
          %v695 = vmul.f32 %v631, %v345
          %v696 = vmul.f32 %v632, %v346
          %v697 = vmul.f32 %v633, %v339
          %v698 = vmul.f32 %v634, %v340
          %v699 = vmul.f32 %v635, %v341
          %v700 = vmul.f32 %v636, %v342
          %v701 = vmul.f32 %v637, %v343
          %v702 = vmul.f32 %v638, %v344
          %v703 = vmul.f32 %v639, %v345
          %v704 = vmul.f32 %v640, %v346
          %v705 = vld [vmem:[#allocation2] sm:$0x1]
          %v706 = vadd.f32 %v641, %v642
          %v707 = vadd.f32 %v706, %v643
          %v708 = vadd.f32 %v707, %v644
          %v709 = vadd.f32 %v708, %v645
          %v710 = vadd.f32 %v709, %v646
          %v711 = vadd.f32 %v710, %v647
          %v712 = vadd.f32 %v711, %v648
          %v713 = vadd.f32 %v712, %v649
          %v714 = vadd.f32 %v713, %v650
          %v715 = vadd.f32 %v714, %v651
          %v716 = vadd.f32 %v715, %v652
          %v717 = vadd.f32 %v716, %v653
          %v718 = vadd.f32 %v717, %v654
          %v719 = vadd.f32 %v718, %v655
          %v720 = vadd.f32 %v719, %v656
          %v721 = vadd.f32 %v720, %v657
          %v722 = vadd.f32 %v721, %v658
          %v723 = vadd.f32 %v722, %v659
          %v724 = vadd.f32 %v723, %v660
          %v725 = vadd.f32 %v724, %v661
          %v726 = vadd.f32 %v725, %v662
          %v727 = vadd.f32 %v726, %v663
          %v728 = vadd.f32 %v727, %v664
          %v729 = vadd.f32 %v728, %v665
          %v730 = vadd.f32 %v729, %v666
          %v731 = vadd.f32 %v730, %v667
          %v732 = vadd.f32 %v731, %v668
          %v733 = vadd.f32 %v732, %v669
          %v734 = vadd.f32 %v733, %v670
          %v735 = vadd.f32 %v734, %v671
          %v736 = vadd.f32 %v735, %v672
          %v737 = vadd.f32 %v736, %v673
          %v738 = vadd.f32 %v737, %v674
          %v739 = vadd.f32 %v738, %v675
          %v740 = vadd.f32 %v739, %v676
          %v741 = vadd.f32 %v740, %v677
          %v742 = vadd.f32 %v741, %v678
          %v743 = vadd.f32 %v742, %v679
          %v744 = vadd.f32 %v743, %v680
          %v745 = vadd.f32 %v744, %v681
          %v746 = vadd.f32 %v745, %v682
          %v747 = vadd.f32 %v746, %v683
          %v748 = vadd.f32 %v747, %v684
          %v749 = vadd.f32 %v748, %v685
          %v750 = vadd.f32 %v749, %v686
          %v751 = vadd.f32 %v750, %v687
          %v752 = vadd.f32 %v751, %v688
          %v753 = vadd.f32 %v752, %v689
          %v754 = vadd.f32 %v753, %v690
          %v755 = vadd.f32 %v754, %v691
          %v756 = vadd.f32 %v755, %v692
          %v757 = vadd.f32 %v756, %v693
          %v758 = vadd.f32 %v757, %v694
          %v759 = vadd.f32 %v758, %v695
          %v760 = vadd.f32 %v759, %v696
          %v761 = vadd.f32 %v760, %v697
          %v762 = vadd.f32 %v761, %v698
          %v763 = vadd.f32 %v762, %v699
          %v764 = vadd.f32 %v763, %v700
          %v765 = vadd.f32 %v764, %v701
          %v766 = vadd.f32 %v765, %v702
          %v767 = vadd.f32 %v766, %v703
          %v768 = vadd.f32 %v767, %v704
          %769 = vadd.xlane.f32.xlu0 %v768
          %v770 = vpop.xlane.xlu0 %769
          %v771 = vrot.slane %v770, 4
          %v772 = vadd.f32 %v770, %v771
          %v773 = vrot.slane %v772, 2
          %v774 = vadd.f32 %v772, %v773
          %v775 = vrot.slane %v774, 1
          %v776 = vadd.f32 %v774, %v775
          %s777 = vtos %v776
          %v778 = vstv %s777
          %v779 = vadd.f32 %v705, %v778
          %vm780 = vcmask 0
          %781 = vst.msk [vmem:[#allocation2] sm:$0x1] %vm780, %v779
          %v782 = vld [vmem:[#allocation3] sm:$0x1]
          %v783 = vmul.f32 %v641, %v641
          %v784 = vmul.f32 %v642, %v642
          %v785 = vmul.f32 %v643, %v643
          %v786 = vmul.f32 %v644, %v644
          %v787 = vmul.f32 %v645, %v645
          %v788 = vmul.f32 %v646, %v646
          %v789 = vmul.f32 %v647, %v647
          %v790 = vmul.f32 %v648, %v648
          %v791 = vmul.f32 %v649, %v649
          %v792 = vmul.f32 %v650, %v650
          %v793 = vmul.f32 %v651, %v651
          %v794 = vmul.f32 %v652, %v652
          %v795 = vmul.f32 %v653, %v653
          %v796 = vmul.f32 %v654, %v654
          %v797 = vmul.f32 %v655, %v655
          %v798 = vmul.f32 %v656, %v656
          %v799 = vmul.f32 %v657, %v657
          %v800 = vmul.f32 %v658, %v658
          %v801 = vmul.f32 %v659, %v659
          %v802 = vmul.f32 %v660, %v660
          %v803 = vmul.f32 %v661, %v661
          %v804 = vmul.f32 %v662, %v662
          %v805 = vmul.f32 %v663, %v663
          %v806 = vmul.f32 %v664, %v664
          %v807 = vmul.f32 %v665, %v665
          %v808 = vmul.f32 %v666, %v666
          %v809 = vmul.f32 %v667, %v667
          %v810 = vmul.f32 %v668, %v668
          %v811 = vmul.f32 %v669, %v669
          %v812 = vmul.f32 %v670, %v670
          %v813 = vmul.f32 %v671, %v671
          %v814 = vmul.f32 %v672, %v672
          %v815 = vmul.f32 %v673, %v673
          %v816 = vmul.f32 %v674, %v674
          %v817 = vmul.f32 %v675, %v675
          %v818 = vmul.f32 %v676, %v676
          %v819 = vmul.f32 %v677, %v677
          %v820 = vmul.f32 %v678, %v678
          %v821 = vmul.f32 %v679, %v679
          %v822 = vmul.f32 %v680, %v680
          %v823 = vmul.f32 %v681, %v681
          %v824 = vmul.f32 %v682, %v682
          %v825 = vmul.f32 %v683, %v683
          %v826 = vmul.f32 %v684, %v684
          %v827 = vmul.f32 %v685, %v685
          %v828 = vmul.f32 %v686, %v686
          %v829 = vmul.f32 %v687, %v687
          %v830 = vmul.f32 %v688, %v688
          %v831 = vmul.f32 %v689, %v689
          %v832 = vmul.f32 %v690, %v690
          %v833 = vmul.f32 %v691, %v691
          %v834 = vmul.f32 %v692, %v692
          %v835 = vmul.f32 %v693, %v693
          %v836 = vmul.f32 %v694, %v694
          %v837 = vmul.f32 %v695, %v695
          %v838 = vmul.f32 %v696, %v696
          %v839 = vmul.f32 %v697, %v697
          %v840 = vmul.f32 %v698, %v698
          %v841 = vmul.f32 %v699, %v699
          %v842 = vmul.f32 %v700, %v700
          %v843 = vmul.f32 %v701, %v701
          %v844 = vmul.f32 %v702, %v702
          %v845 = vmul.f32 %v703, %v703
          %v846 = vmul.f32 %v704, %v704
          %v847 = vadd.f32 %v783, %v784
          %v848 = vadd.f32 %v847, %v785
          %v849 = vadd.f32 %v848, %v786
          %v850 = vadd.f32 %v849, %v787
          %v851 = vadd.f32 %v850, %v788
          %v852 = vadd.f32 %v851, %v789
          %v853 = vadd.f32 %v852, %v790
          %v854 = vadd.f32 %v853, %v791
          %v855 = vadd.f32 %v854, %v792
          %v856 = vadd.f32 %v855, %v793
          %v857 = vadd.f32 %v856, %v794
          %v858 = vadd.f32 %v857, %v795
          %v859 = vadd.f32 %v858, %v796
          %v860 = vadd.f32 %v859, %v797
          %v861 = vadd.f32 %v860, %v798
          %v862 = vadd.f32 %v861, %v799
          %v863 = vadd.f32 %v862, %v800
          %v864 = vadd.f32 %v863, %v801
          %v865 = vadd.f32 %v864, %v802
          %v866 = vadd.f32 %v865, %v803
          %v867 = vadd.f32 %v866, %v804
          %v868 = vadd.f32 %v867, %v805
          %v869 = vadd.f32 %v868, %v806
          %v870 = vadd.f32 %v869, %v807
          %v871 = vadd.f32 %v870, %v808
          %v872 = vadd.f32 %v871, %v809
          %v873 = vadd.f32 %v872, %v810
          %v874 = vadd.f32 %v873, %v811
          %v875 = vadd.f32 %v874, %v812
          %v876 = vadd.f32 %v875, %v813
          %v877 = vadd.f32 %v876, %v814
          %v878 = vadd.f32 %v877, %v815
          %v879 = vadd.f32 %v878, %v816
          %v880 = vadd.f32 %v879, %v817
          %v881 = vadd.f32 %v880, %v818
          %v882 = vadd.f32 %v881, %v819
          %v883 = vadd.f32 %v882, %v820
          %v884 = vadd.f32 %v883, %v821
          %v885 = vadd.f32 %v884, %v822
          %v886 = vadd.f32 %v885, %v823
          %v887 = vadd.f32 %v886, %v824
          %v888 = vadd.f32 %v887, %v825
          %v889 = vadd.f32 %v888, %v826
          %v890 = vadd.f32 %v889, %v827
          %v891 = vadd.f32 %v890, %v828
          %v892 = vadd.f32 %v891, %v829
          %v893 = vadd.f32 %v892, %v830
          %v894 = vadd.f32 %v893, %v831
          %v895 = vadd.f32 %v894, %v832
          %v896 = vadd.f32 %v895, %v833
          %v897 = vadd.f32 %v896, %v834
          %v898 = vadd.f32 %v897, %v835
          %v899 = vadd.f32 %v898, %v836
          %v900 = vadd.f32 %v899, %v837
          %v901 = vadd.f32 %v900, %v838
          %v902 = vadd.f32 %v901, %v839
          %v903 = vadd.f32 %v902, %v840
          %v904 = vadd.f32 %v903, %v841
          %v905 = vadd.f32 %v904, %v842
          %v906 = vadd.f32 %v905, %v843
          %v907 = vadd.f32 %v906, %v844
          %v908 = vadd.f32 %v907, %v845
          %v909 = vadd.f32 %v908, %v846
          %910 = vadd.xlane.f32.xlu0 %v909
          %v911 = vpop.xlane.xlu0 %910
          %v912 = vrot.slane %v911, 4
          %v913 = vadd.f32 %v911, %v912
          %v914 = vrot.slane %v913, 2
          %v915 = vadd.f32 %v913, %v914
          %v916 = vrot.slane %v915, 1
          %v917 = vadd.f32 %v915, %v916
          %s918 = vtos %v917
          %v919 = vstv %s918
          %v920 = vadd.f32 %v782, %v919
          %921 = vst.msk [vmem:[#allocation3] sm:$0x1] %vm780, %v920
          %p922 = scmp.eq.s32.totalorder %s27, 1
          // Predicated region
          $region45: #{tpu_custom_call.1} parent=39 // pred_check
            %p923 = pneg %p922
          $region46: #{tpu_custom_call.1} parent=39 // pred_check_branch
            %925 = sbr.rel (%p923) target = $region48
          $region47: #{tpu_custom_call.1} parent=39 // pred_region
            %v926 = vld [vmem:[#allocation2] sm:$0x1]
            %v927 = vmul.f32 %v926, 7.6293945e-06
            %v928 = vld [vmem:[#allocation3] sm:$0x1]
            %v929 = vmul.f32 %v928, 7.6293945e-06
            %v930 = vmul.f32 %v927, %v927
            %v931 = vsub.f32 %v929, %v930
            %v932 = vmax.f32 %v931, 0.0
            %v933 = vld [vmem:[#allocation4] sm:$0x1]
            %v934 = vadd.f32 %v933, %v927
            %935 = vst.msk [vmem:[#allocation2] sm:$0x1] %vm780, %v934
            %v936 = vrsqrt.pop %v932
            %v937 = vmul.f32 %v932, %v936
            %vm938 = vcmp.eq.f32.partialorder %v932, inf
            %v939 = vsel %vm938, %v932, %v937
            %vm940 = vcmp.eq.f32.partialorder %v932, 0.0
            %v941 = vand.u32 %v932, 2147483648
            %v942 = vsel %vm940, %v941, %v939
            %943 = vst.msk [vmem:[#allocation3] sm:$0x1] %vm780, %v942
          $region48: #{tpu_custom_call.1} parent=39 // pred_fallthru
            _
        $region40: #{tpu_custom_call.1} parent=27 // pred_fallthru
          _
        %p944 = scmp.eq.s32.totalorder %s26, 1
        // Predicated region
        $region49: #{tpu_custom_call.1} parent=27 // pred_check
          %p945 = pneg %p944
        $region50: #{tpu_custom_call.1} parent=27 // pred_check_branch
          %947 = sbr.rel (%p945) target = $region52
        $region51: #{tpu_custom_call.1} parent=27 // pred_region
          %v948 = vld [vmem:[%s202] sm:$0xff]
          %v949 = vld [vmem:[%s202 + $0x8] sm:$0xff]
          %v950 = vld [vmem:[%s202 + $0x10] sm:$0xff]
          %v951 = vld [vmem:[%s202 + $0x18] sm:$0xff]
          %v952 = vld [vmem:[%s202 + $0x20] sm:$0xff]
          %v953 = vld [vmem:[%s202 + $0x28] sm:$0xff]
          %v954 = vld [vmem:[%s202 + $0x30] sm:$0xff]
          %v955 = vld [vmem:[%s202 + $0x38] sm:$0xff]
          %v956 = vld [vmem:[%s202 + $0x40] sm:$0xff]
          %v957 = vld [vmem:[%s202 + $0x48] sm:$0xff]
          %v958 = vld [vmem:[%s202 + $0x50] sm:$0xff]
          %v959 = vld [vmem:[%s202 + $0x58] sm:$0xff]
          %v960 = vld [vmem:[%s202 + $0x60] sm:$0xff]
          %v961 = vld [vmem:[%s202 + $0x68] sm:$0xff]
          %v962 = vld [vmem:[%s202 + $0x70] sm:$0xff]
          %v963 = vld [vmem:[%s202 + $0x78] sm:$0xff]
          %v964 = vld [vmem:[%s202 + $0x80] sm:$0xff]
          %v965 = vld [vmem:[%s202 + $0x88] sm:$0xff]
          %v966 = vld [vmem:[%s202 + $0x90] sm:$0xff]
          %v967 = vld [vmem:[%s202 + $0x98] sm:$0xff]
          %v968 = vld [vmem:[%s202 + $0xa0] sm:$0xff]
          %v969 = vld [vmem:[%s202 + $0xa8] sm:$0xff]
          %v970 = vld [vmem:[%s202 + $0xb0] sm:$0xff]
          %v971 = vld [vmem:[%s202 + $0xb8] sm:$0xff]
          %v972 = vld [vmem:[%s202 + $0xc0] sm:$0xff]
          %v973 = vld [vmem:[%s202 + $0xc8] sm:$0xff]
          %v974 = vld [vmem:[%s202 + $0xd0] sm:$0xff]
          %v975 = vld [vmem:[%s202 + $0xd8] sm:$0xff]
          %v976 = vld [vmem:[%s202 + $0xe0] sm:$0xff]
          %v977 = vld [vmem:[%s202 + $0xe8] sm:$0xff]
          %v978 = vld [vmem:[%s202 + $0xf0] sm:$0xff]
          %v979 = vld [vmem:[%s202 + $0xf8] sm:$0xff]
          %v980 = vld [vmem:[%s202 + $0x100] sm:$0xff]
          %v981 = vld [vmem:[%s202 + $0x108] sm:$0xff]
          %v982 = vld [vmem:[%s202 + $0x110] sm:$0xff]
          %v983 = vld [vmem:[%s202 + $0x118] sm:$0xff]
          %v984 = vld [vmem:[%s202 + $0x120] sm:$0xff]
          %v985 = vld [vmem:[%s202 + $0x128] sm:$0xff]
          %v986 = vld [vmem:[%s202 + $0x130] sm:$0xff]
          %v987 = vld [vmem:[%s202 + $0x138] sm:$0xff]
          %v988 = vld [vmem:[%s202 + $0x140] sm:$0xff]
          %v989 = vld [vmem:[%s202 + $0x148] sm:$0xff]
          %v990 = vld [vmem:[%s202 + $0x150] sm:$0xff]
          %v991 = vld [vmem:[%s202 + $0x158] sm:$0xff]
          %v992 = vld [vmem:[%s202 + $0x160] sm:$0xff]
          %v993 = vld [vmem:[%s202 + $0x168] sm:$0xff]
          %v994 = vld [vmem:[%s202 + $0x170] sm:$0xff]
          %v995 = vld [vmem:[%s202 + $0x178] sm:$0xff]
          %v996 = vld [vmem:[%s202 + $0x180] sm:$0xff]
          %v997 = vld [vmem:[%s202 + $0x188] sm:$0xff]
          %v998 = vld [vmem:[%s202 + $0x190] sm:$0xff]
          %v999 = vld [vmem:[%s202 + $0x198] sm:$0xff]
          %v1000 = vld [vmem:[%s202 + $0x1a0] sm:$0xff]
          %v1001 = vld [vmem:[%s202 + $0x1a8] sm:$0xff]
          %v1002 = vld [vmem:[%s202 + $0x1b0] sm:$0xff]
          %v1003 = vld [vmem:[%s202 + $0x1b8] sm:$0xff]
          %v1004 = vld [vmem:[%s202 + $0x1c0] sm:$0xff]
          %v1005 = vld [vmem:[%s202 + $0x1c8] sm:$0xff]
          %v1006 = vld [vmem:[%s202 + $0x1d0] sm:$0xff]
          %v1007 = vld [vmem:[%s202 + $0x1d8] sm:$0xff]
          %v1008 = vld [vmem:[%s202 + $0x1e0] sm:$0xff]
          %v1009 = vld [vmem:[%s202 + $0x1e8] sm:$0xff]
          %v1010 = vld [vmem:[%s202 + $0x1f0] sm:$0xff]
          %v1011 = vld [vmem:[%s202 + $0x1f8] sm:$0xff]
          %v1012 = vld [vmem:[#allocation3] sm:$0x1]
          %v1014 = vlaneseq
          %v1015 = vshrl.u32 %v1014, 7
          %v1016 = vsub.s32 0, %v1015
          %v1017 = vrot.slane %v1012, %v1016
          %1018 = vset.pattern.permute.xlu0 0
          %1019 = vperm.xlu0 %1018, %v1017
          %v1020 = vpop.permute.xlu0 %1019
          %v1022 = vmul.f32 %v948, %v1020
          %v1023 = vmul.f32 %v949, %v1020
          %v1024 = vmul.f32 %v950, %v1020
          %v1025 = vmul.f32 %v951, %v1020
          %v1026 = vmul.f32 %v952, %v1020
          %v1027 = vmul.f32 %v953, %v1020
          %v1028 = vmul.f32 %v954, %v1020
          %v1029 = vmul.f32 %v955, %v1020
          %v1030 = vmul.f32 %v956, %v1020
          %v1031 = vmul.f32 %v957, %v1020
          %v1032 = vmul.f32 %v958, %v1020
          %v1033 = vmul.f32 %v959, %v1020
          %v1034 = vmul.f32 %v960, %v1020
          %v1035 = vmul.f32 %v961, %v1020
          %v1036 = vmul.f32 %v962, %v1020
          %v1037 = vmul.f32 %v963, %v1020
          %v1038 = vmul.f32 %v964, %v1020
          %v1039 = vmul.f32 %v965, %v1020
          %v1040 = vmul.f32 %v966, %v1020
          %v1041 = vmul.f32 %v967, %v1020
          %v1042 = vmul.f32 %v968, %v1020
          %v1043 = vmul.f32 %v969, %v1020
          %v1044 = vmul.f32 %v970, %v1020
          %v1045 = vmul.f32 %v971, %v1020
          %v1046 = vmul.f32 %v972, %v1020
          %v1047 = vmul.f32 %v973, %v1020
          %v1048 = vmul.f32 %v974, %v1020
          %v1049 = vmul.f32 %v975, %v1020
          %v1050 = vmul.f32 %v976, %v1020
          %v1051 = vmul.f32 %v977, %v1020
          %v1052 = vmul.f32 %v978, %v1020
          %v1053 = vmul.f32 %v979, %v1020
          %v1054 = vmul.f32 %v980, %v1020
          %v1055 = vmul.f32 %v981, %v1020
          %v1056 = vmul.f32 %v982, %v1020
          %v1057 = vmul.f32 %v983, %v1020
          %v1058 = vmul.f32 %v984, %v1020
          %v1059 = vmul.f32 %v985, %v1020
          %v1060 = vmul.f32 %v986, %v1020
          %v1061 = vmul.f32 %v987, %v1020
          %v1062 = vmul.f32 %v988, %v1020
          %v1063 = vmul.f32 %v989, %v1020
          %v1064 = vmul.f32 %v990, %v1020
          %v1065 = vmul.f32 %v991, %v1020
          %v1066 = vmul.f32 %v992, %v1020
          %v1067 = vmul.f32 %v993, %v1020
          %v1068 = vmul.f32 %v994, %v1020
          %v1069 = vmul.f32 %v995, %v1020
          %v1070 = vmul.f32 %v996, %v1020
          %v1071 = vmul.f32 %v997, %v1020
          %v1072 = vmul.f32 %v998, %v1020
          %v1073 = vmul.f32 %v999, %v1020
          %v1074 = vmul.f32 %v1000, %v1020
          %v1075 = vmul.f32 %v1001, %v1020
          %v1076 = vmul.f32 %v1002, %v1020
          %v1077 = vmul.f32 %v1003, %v1020
          %v1078 = vmul.f32 %v1004, %v1020
          %v1079 = vmul.f32 %v1005, %v1020
          %v1080 = vmul.f32 %v1006, %v1020
          %v1081 = vmul.f32 %v1007, %v1020
          %v1082 = vmul.f32 %v1008, %v1020
          %v1083 = vmul.f32 %v1009, %v1020
          %v1084 = vmul.f32 %v1010, %v1020
          %v1085 = vmul.f32 %v1011, %v1020
          %v1086 = vld [vmem:[#allocation2] sm:$0x1]
          %v1088 = vlaneseq
          %v1089 = vshrl.u32 %v1088, 7
          %v1090 = vsub.s32 0, %v1089
          %v1091 = vrot.slane %v1086, %v1090
          %1092 = vset.pattern.permute.xlu0 0
          %1093 = vperm.xlu0 %1092, %v1091
          %v1094 = vpop.permute.xlu0 %1093
          %v1096 = vadd.f32 %v1022, %v1094
          %v1097 = vadd.f32 %v1023, %v1094
          %v1098 = vadd.f32 %v1024, %v1094
          %v1099 = vadd.f32 %v1025, %v1094
          %v1100 = vadd.f32 %v1026, %v1094
          %v1101 = vadd.f32 %v1027, %v1094
          %v1102 = vadd.f32 %v1028, %v1094
          %v1103 = vadd.f32 %v1029, %v1094
          %v1104 = vadd.f32 %v1030, %v1094
          %v1105 = vadd.f32 %v1031, %v1094
          %v1106 = vadd.f32 %v1032, %v1094
          %v1107 = vadd.f32 %v1033, %v1094
          %v1108 = vadd.f32 %v1034, %v1094
          %v1109 = vadd.f32 %v1035, %v1094
          %v1110 = vadd.f32 %v1036, %v1094
          %v1111 = vadd.f32 %v1037, %v1094
          %v1112 = vadd.f32 %v1038, %v1094
          %v1113 = vadd.f32 %v1039, %v1094
          %v1114 = vadd.f32 %v1040, %v1094
          %v1115 = vadd.f32 %v1041, %v1094
          %v1116 = vadd.f32 %v1042, %v1094
          %v1117 = vadd.f32 %v1043, %v1094
          %v1118 = vadd.f32 %v1044, %v1094
          %v1119 = vadd.f32 %v1045, %v1094
          %v1120 = vadd.f32 %v1046, %v1094
          %v1121 = vadd.f32 %v1047, %v1094
          %v1122 = vadd.f32 %v1048, %v1094
          %v1123 = vadd.f32 %v1049, %v1094
          %v1124 = vadd.f32 %v1050, %v1094
          %v1125 = vadd.f32 %v1051, %v1094
          %v1126 = vadd.f32 %v1052, %v1094
          %v1127 = vadd.f32 %v1053, %v1094
          %v1128 = vadd.f32 %v1054, %v1094
          %v1129 = vadd.f32 %v1055, %v1094
          %v1130 = vadd.f32 %v1056, %v1094
          %v1131 = vadd.f32 %v1057, %v1094
          %v1132 = vadd.f32 %v1058, %v1094
          %v1133 = vadd.f32 %v1059, %v1094
          %v1134 = vadd.f32 %v1060, %v1094
          %v1135 = vadd.f32 %v1061, %v1094
          %v1136 = vadd.f32 %v1062, %v1094
          %v1137 = vadd.f32 %v1063, %v1094
          %v1138 = vadd.f32 %v1064, %v1094
          %v1139 = vadd.f32 %v1065, %v1094
          %v1140 = vadd.f32 %v1066, %v1094
          %v1141 = vadd.f32 %v1067, %v1094
          %v1142 = vadd.f32 %v1068, %v1094
          %v1143 = vadd.f32 %v1069, %v1094
          %v1144 = vadd.f32 %v1070, %v1094
          %v1145 = vadd.f32 %v1071, %v1094
          %v1146 = vadd.f32 %v1072, %v1094
          %v1147 = vadd.f32 %v1073, %v1094
          %v1148 = vadd.f32 %v1074, %v1094
          %v1149 = vadd.f32 %v1075, %v1094
          %v1150 = vadd.f32 %v1076, %v1094
          %v1151 = vadd.f32 %v1077, %v1094
          %v1152 = vadd.f32 %v1078, %v1094
          %v1153 = vadd.f32 %v1079, %v1094
          %v1154 = vadd.f32 %v1080, %v1094
          %v1155 = vadd.f32 %v1081, %v1094
          %v1156 = vadd.f32 %v1082, %v1094
          %v1157 = vadd.f32 %v1083, %v1094
          %v1158 = vadd.f32 %v1084, %v1094
          %v1159 = vadd.f32 %v1085, %v1094
          %1160 = vst [vmem:[%s227] sm:$0xff] %v1096
          %1161 = vst [vmem:[%s227 + $0x8] sm:$0xff] %v1097
          %1162 = vst [vmem:[%s227 + $0x10] sm:$0xff] %v1098
          %1163 = vst [vmem:[%s227 + $0x18] sm:$0xff] %v1099
          %1164 = vst [vmem:[%s227 + $0x20] sm:$0xff] %v1100
          %1165 = vst [vmem:[%s227 + $0x28] sm:$0xff] %v1101
          %1166 = vst [vmem:[%s227 + $0x30] sm:$0xff] %v1102
          %1167 = vst [vmem:[%s227 + $0x38] sm:$0xff] %v1103
          %1168 = vst [vmem:[%s227 + $0x40] sm:$0xff] %v1104
          %1169 = vst [vmem:[%s227 + $0x48] sm:$0xff] %v1105
          %1170 = vst [vmem:[%s227 + $0x50] sm:$0xff] %v1106
          %1171 = vst [vmem:[%s227 + $0x58] sm:$0xff] %v1107
          %1172 = vst [vmem:[%s227 + $0x60] sm:$0xff] %v1108
          %1173 = vst [vmem:[%s227 + $0x68] sm:$0xff] %v1109
          %1174 = vst [vmem:[%s227 + $0x70] sm:$0xff] %v1110
          %1175 = vst [vmem:[%s227 + $0x78] sm:$0xff] %v1111
          %1176 = vst [vmem:[%s227 + $0x80] sm:$0xff] %v1112
          %1177 = vst [vmem:[%s227 + $0x88] sm:$0xff] %v1113
          %1178 = vst [vmem:[%s227 + $0x90] sm:$0xff] %v1114
          %1179 = vst [vmem:[%s227 + $0x98] sm:$0xff] %v1115
          %1180 = vst [vmem:[%s227 + $0xa0] sm:$0xff] %v1116
          %1181 = vst [vmem:[%s227 + $0xa8] sm:$0xff] %v1117
          %1182 = vst [vmem:[%s227 + $0xb0] sm:$0xff] %v1118
          %1183 = vst [vmem:[%s227 + $0xb8] sm:$0xff] %v1119
          %1184 = vst [vmem:[%s227 + $0xc0] sm:$0xff] %v1120
          %1185 = vst [vmem:[%s227 + $0xc8] sm:$0xff] %v1121
          %1186 = vst [vmem:[%s227 + $0xd0] sm:$0xff] %v1122
          %1187 = vst [vmem:[%s227 + $0xd8] sm:$0xff] %v1123
          %1188 = vst [vmem:[%s227 + $0xe0] sm:$0xff] %v1124
          %1189 = vst [vmem:[%s227 + $0xe8] sm:$0xff] %v1125
          %1190 = vst [vmem:[%s227 + $0xf0] sm:$0xff] %v1126
          %1191 = vst [vmem:[%s227 + $0xf8] sm:$0xff] %v1127
          %1192 = vst [vmem:[%s227 + $0x100] sm:$0xff] %v1128
          %1193 = vst [vmem:[%s227 + $0x108] sm:$0xff] %v1129
          %1194 = vst [vmem:[%s227 + $0x110] sm:$0xff] %v1130
          %1195 = vst [vmem:[%s227 + $0x118] sm:$0xff] %v1131
          %1196 = vst [vmem:[%s227 + $0x120] sm:$0xff] %v1132
          %1197 = vst [vmem:[%s227 + $0x128] sm:$0xff] %v1133
          %1198 = vst [vmem:[%s227 + $0x130] sm:$0xff] %v1134
          %1199 = vst [vmem:[%s227 + $0x138] sm:$0xff] %v1135
          %1200 = vst [vmem:[%s227 + $0x140] sm:$0xff] %v1136
          %1201 = vst [vmem:[%s227 + $0x148] sm:$0xff] %v1137
          %1202 = vst [vmem:[%s227 + $0x150] sm:$0xff] %v1138
          %1203 = vst [vmem:[%s227 + $0x158] sm:$0xff] %v1139
          %1204 = vst [vmem:[%s227 + $0x160] sm:$0xff] %v1140
          %1205 = vst [vmem:[%s227 + $0x168] sm:$0xff] %v1141
          %1206 = vst [vmem:[%s227 + $0x170] sm:$0xff] %v1142
          %1207 = vst [vmem:[%s227 + $0x178] sm:$0xff] %v1143
          %1208 = vst [vmem:[%s227 + $0x180] sm:$0xff] %v1144
          %1209 = vst [vmem:[%s227 + $0x188] sm:$0xff] %v1145
          %1210 = vst [vmem:[%s227 + $0x190] sm:$0xff] %v1146
          %1211 = vst [vmem:[%s227 + $0x198] sm:$0xff] %v1147
          %1212 = vst [vmem:[%s227 + $0x1a0] sm:$0xff] %v1148
          %1213 = vst [vmem:[%s227 + $0x1a8] sm:$0xff] %v1149
          %1214 = vst [vmem:[%s227 + $0x1b0] sm:$0xff] %v1150
          %1215 = vst [vmem:[%s227 + $0x1b8] sm:$0xff] %v1151
          %1216 = vst [vmem:[%s227 + $0x1c0] sm:$0xff] %v1152
          %1217 = vst [vmem:[%s227 + $0x1c8] sm:$0xff] %v1153
          %1218 = vst [vmem:[%s227 + $0x1d0] sm:$0xff] %v1154
          %1219 = vst [vmem:[%s227 + $0x1d8] sm:$0xff] %v1155
          %1220 = vst [vmem:[%s227 + $0x1e0] sm:$0xff] %v1156
          %1221 = vst [vmem:[%s227 + $0x1e8] sm:$0xff] %v1157
          %1222 = vst [vmem:[%s227 + $0x1f0] sm:$0xff] %v1158
          %1223 = vst [vmem:[%s227 + $0x1f8] sm:$0xff] %v1159
        $region52: #{tpu_custom_call.1} parent=27 // pred_fallthru
          _
        %s1224 = sand.u32 %s104, 1
        %s1225 = scalar_lea.sflag [#allocation7], %s1224
        %s1226 = sand.u32 %s104, 1
        %s1227 = smul.addr %s1226, 512
        %s1228 = scalar_lea.vmem [#allocation10], %s1227
        // Predicated region
        $region53: #{tpu_custom_call.1} parent=27 // pred_check
          %p1229 = pneg %p114
        $region54: #{tpu_custom_call.1} parent=27 // pred_check_branch
          %1231 = sbr.rel (%p1229) target = $region56
        $region55: #{tpu_custom_call.1} parent=27 // pred_region
          %s1232 = smul.u32 %s27, %s26
          %s1233 = smul.u32 8, %s1232
          %s1235 = ssub.s32 8192, 8192
          %1236 = vsyncadd %s1225, %s1235
          %s1237 = smul.addr %s1233, 128
          %s1238 = scalar_lea.hbm %s2, %s1237
          %s1239 = sshll.u32 %s1228, 4
          %s1240 = int_to_ptr.vmem [resolvable:$true] %s1239
          %1245 = dma.vmem_to_hbm [thread:$0]  %s1240, 8192, %s1238, %s1225, 1024, 2048, 64
        $region56: #{tpu_custom_call.1} parent=27 // pred_fallthru
          _
      $region28: #{tpu_custom_call.1} parent=5 // pred_fallthru
        _
      %p1246 = scmp.le.s32.totalorder 2, %s17
      // Predicated region
      $region57: #{tpu_custom_call.1} parent=5 // pred_check
        %p1247 = pneg %p1246
      $region58: #{tpu_custom_call.1} parent=5 // pred_check_branch
        %1249 = sbr.rel (%p1247) target = $region60
      $region59: #{tpu_custom_call.1} parent=5 // pred_region
        %s1250 = ssub.s32 %s17, 2
        // Predicated region
        $region61: #{tpu_custom_call.1} parent=59 // pred_check
          %p1251 = pneg %p120
        $region62: #{tpu_custom_call.1} parent=59 // pred_check_branch
          %1253 = sbr.rel (%p1251) target = $region64
        $region63: #{tpu_custom_call.1} parent=59 // pred_region
          %s1254 = sand.u32 %s105, 1
          %s1255 = scalar_lea.sflag [#allocation7], %s1254
          %s1256 = sand.u32 %s105, 1
          %s1257 = smul.addr %s1256, 512
          %s1258 = scalar_lea.vmem [#allocation10], %s1257
          %1259 = dma.done %s1255, 8192
        $region64: #{tpu_custom_call.1} parent=59 // pred_fallthru
          _
      $region60: #{tpu_custom_call.1} parent=5 // pred_fallthru
        _
    $region6: #{tpu_custom_call.1} parent=1 // loop_footer
      %s21 = sadd.s32 1, %s17
    $region7: #{tpu_custom_call.1} parent=1 // loop_footer_branch
      %16 = sbr.rel target = $region3
    $region8: #{tpu_custom_call.1} parent=1 // loop_exit
      _
    %1260 = vsyncpa [#allocation6], 1
    %s1261 = scalar_lea.sflag [#allocation6], 1
    %1262 = vsyncpa %s1261, 1
    %1263 = vsyncpa [#allocation9], 1
    %s1264 = scalar_lea.sflag [#allocation9], 1
    %1265 = vsyncpa %s1264, 1
    %1266 = vsyncpa [#allocation7], 1
    %s1267 = scalar_lea.sflag [#allocation7], 1
    %1268 = vsyncpa %s1267, 1

</llo_original>
